<compile_context>
chip_gen: v7x
topology: tpu7x:2x2x1
jax: 0.10.0
libtpu: 0.0.40
codegen_flags: <defaults>
</compile_context>

<pallas_src>
import functools

import jax
import jax.numpy as jnp
from jax.experimental import pallas as pl
from jax.experimental.pallas import tpu as pltpu


def _graph_attention_kernel(x_ref, e_ref, wqx_ref, wqe_ref, bq_ref,
                            wkx_ref, wke_ref, bk_ref,
                            w1_ref, w2_ref, bm_ref, out_ref,
                            *, inv_temp, t_tile):
    f32 = jnp.float32
    bf16 = jnp.bfloat16

    # Embedding contribution to the Q/K projections: constant across (b, t),
    # so compute it once per grid step, outside the time loop.
    e = e_ref[...]                                                     # (N, E) bf16
    qe = jnp.dot(e, wqe_ref[...], preferred_element_type=f32) + bq_ref[...]   # (N, d)
    ke = jnp.dot(e, wke_ref[...], preferred_element_type=f32) + bk_ref[...]   # (N, d)

    # Static unroll over the (small, compile-time) time tile.
    for t in range(t_tile):
        x = x_ref[t]                                                   # (N, C) bf16

        # Q / K projections (1x1 conv == matmul over channels), split-weight
        # accumulation instead of concatenating [x, embedding].
        q = (jnp.dot(x, wqx_ref[...], preferred_element_type=f32) + qe) * inv_temp
        k = jnp.dot(x, wkx_ref[...], preferred_element_type=f32) + ke  # (N, d)

        # St[m, n] = <k_m, q_n / sqrt(d)>  ==  (Q K^T / sqrt(d))^T.
        # NT contraction only (no transposed-LHS matmul needed).
        st = jax.lax.dot_general(
            k.astype(bf16), q.astype(bf16), (((1,), (1,)), ((), ())),
            preferred_element_type=f32)                                # (N, N)

        # softmax over keys m == axis 0 of St; reciprocal on the EUP slot.
        mx = jnp.max(st, axis=0, keepdims=True)
        p = jnp.exp(st - mx)
        a_t = p * pl.reciprocal(jnp.sum(p, axis=0, keepdims=True), approx=True)
        # a_t == attention^T

        # x_new (node-major) = A^T @ X   ==  the module's  x @ attention.
        x_new = jnp.dot(a_t.astype(bf16), x, preferred_element_type=f32)  # (N, C)

        # Output 1x1 conv on cat([x, x_new]) as split-weight accumulation.
        # Result is channel-major (c_out, N) so the store is lane-dense in N.
        h = (jax.lax.dot_general(w1_ref[...], x, (((1,), (1,)), ((), ())),
                                 preferred_element_type=f32)
             + jax.lax.dot_general(w2_ref[...], x_new.astype(bf16),
                                   (((1,), (1,)), ((), ())),
                                   preferred_element_type=f32)
             + bm_ref[...])                                            # (c_out, N)
        out_ref[t] = h


def graph_attention(x, embedding, wq, bq, wk, bk, wm, bm, *, d, t_tile=None):
    """Pallas TPU forward of `graphattention` (default branch, eval mode).

    x:         (B, c_in, N, T) f32
    embedding: (emb, N)        f32
    wq, wk:    (d, c_in+emb)   squeezed Conv2d(1x1) weights;  bq, bk: (d,)
    wm:        (c_out, 2*c_in) squeezed Conv2d(1x1) weight of self.mlp; bm: (c_out,)
    Returns (h, 0) with h of shape (B, c_out, N, T), like the PyTorch module.
    """
    B, c_in, N, T = x.shape
    emb = embedding.shape[0]
    c_out = wm.shape[0]
    tt = T if t_tile is None else t_tile
    assert T % tt == 0, "t_tile must divide T"

    bf16 = jnp.bfloat16
    # Layout: nodes on sublanes, channels on lanes; time tiled on the grid.
    # Matmul operands in bf16 (f32 accumulate); biases stay f32.
    x_nm = jnp.transpose(x, (0, 3, 2, 1)).astype(bf16)                 # (B, T, N, C)
    e_nm = embedding.T.astype(bf16)                                    # (N, E)
    wqx_t, wqe_t = wq[:, :c_in].T.astype(bf16), wq[:, c_in:].T.astype(bf16)
    wkx_t, wke_t = wk[:, :c_in].T.astype(bf16), wk[:, c_in:].T.astype(bf16)
    w1, w2 = wm[:, :c_in].astype(bf16), wm[:, c_in:].astype(bf16)
    bq_r = bq.reshape(1, d).astype(jnp.float32)
    bk_r = bk.reshape(1, d).astype(jnp.float32)
    bm_c = bm.reshape(c_out, 1).astype(jnp.float32)

    kernel = functools.partial(_graph_attention_kernel,
                               inv_temp=1.0 / (d ** 0.5), t_tile=tt)
    const = lambda b, s: (0, 0)

    out = pl.pallas_call(
        kernel,
        out_shape=jax.ShapeDtypeStruct((B, T, c_out, N), jnp.float32),
        grid=(B, T // tt),
        in_specs=[
            pl.BlockSpec((None, tt, N, c_in), lambda b, s: (b, s, 0, 0)),
            pl.BlockSpec((N, emb), const),
            pl.BlockSpec((c_in, d), const),
            pl.BlockSpec((emb, d), const),
            pl.BlockSpec((1, d), const),
            pl.BlockSpec((c_in, d), const),
            pl.BlockSpec((emb, d), const),
            pl.BlockSpec((1, d), const),
            pl.BlockSpec((c_out, c_in), const),
            pl.BlockSpec((c_out, c_in), const),
            pl.BlockSpec((c_out, 1), const),
        ],
        out_specs=pl.BlockSpec((None, tt, c_out, N), lambda b, s: (b, s, 0, 0)),
        compiler_params=pltpu.CompilerParams(
            dimension_semantics=("parallel", "parallel")),
    )(x_nm, e_nm, wqx_t, wqe_t, bq_r, wkx_t, wke_t, bk_r, w1, w2, bm_c)

    h = jnp.transpose(out, (0, 2, 3, 1))                               # (B, c_out, N, T)
    return h, 0


def reference_graph_attention(x, embedding, wq, bq, wk, bk, wm, bm, *, d):
    """Plain-JAX f32 reference mirroring the PyTorch module (eval, default branch)."""
    B, c_in, N, T = x.shape
    emb = embedding.shape[0]
    hp = "highest"
    e = jnp.broadcast_to(embedding[None, None], (B, T, emb, N))
    e = jnp.transpose(e, (0, 2, 3, 1))                                 # (B, emb, N, T)
    xe = jnp.concatenate([x, e], axis=1)                               # (B, c_in+emb, N, T)
    q = jnp.einsum("oi,bint->bont", wq, xe, precision=hp) + bq[None, :, None, None]
    k = jnp.einsum("oi,bint->bont", wk, xe, precision=hp) + bk[None, :, None, None]
    query = jnp.transpose(q, (0, 3, 2, 1))                             # (B, T, N, d)
    key = jnp.transpose(k, (0, 3, 2, 1))                               # (B, T, N, d)
    attn = jnp.einsum("btnd,btmd->btnm", query, key, precision=hp) / (d ** 0.5)
    attn = jax.nn.softmax(attn, axis=-1)
    xp = jnp.transpose(x, (0, 3, 1, 2))                                # (B, T, c_in, N)
    xa = jnp.einsum("btcn,btnm->btcm", xp, attn, precision=hp)         # (B, T, c_in, N)
    xa = jnp.transpose(xa, (0, 2, 3, 1))                               # (B, c_in, N, T)
    h = jnp.concatenate([x, xa], axis=1)                               # (B, 2*c_in, N, T)
    out = jnp.einsum("oi,bint->bont", wm, h, precision=hp) + bm[None, :, None, None]
    return out, 0


if __name__ == "__main__":
    # Small shapes consistent with the module: x (B, c_in, N, T), emb (emb, N).
    B, c_in, N, T = 2, 4, 16, 8
    d, emb, c_out = 16, 8, 8

    key = jax.random.PRNGKey(0)
    kx, ke, k1, k2, k3, k4, k5, k6 = jax.random.split(key, 8)

    x = jax.random.normal(kx, (B, c_in, N, T), dtype=jnp.float32)
    embedding = jax.random.normal(ke, (emb, N), dtype=jnp.float32)

    wq = 0.1 * jax.random.normal(k1, (d, c_in + emb), dtype=jnp.float32)
    bq = 0.1 * jax.random.normal(k2, (d,), dtype=jnp.float32)
    wk = 0.1 * jax.random.normal(k3, (d, c_in + emb), dtype=jnp.float32)
    bk = 0.1 * jax.random.normal(k4, (d,), dtype=jnp.float32)
    wm = 0.1 * jax.random.normal(k5, (c_out, 2 * c_in), dtype=jnp.float32)
    bm = 0.1 * jax.random.normal(k6, (c_out,), dtype=jnp.float32)

    h, zero = graph_attention(x, embedding, wq, bq, wk, bk, wm, bm, d=d, t_tile=4)
    h = jax.block_until_ready(h)

    h_ref, _ = reference_graph_attention(x, embedding, wq, bq, wk, bk, wm, bm, d=d)

    assert h.shape == (B, c_out, N, T)
    assert zero == 0
    max_err = jnp.max(jnp.abs(h - h_ref))
    # bf16 matmul operands (f32 accumulation) -> slightly loosened tolerance.
    assert jnp.allclose(h, h_ref, atol=2e-2, rtol=2e-2), f"max abs err {max_err}"

    print("KERNEL_OK")
</pallas_src>

<mosaic_0001>
module attributes {stable_mosaic.version = 11 : i64} {
  func.func @_graph_attention_kernel(%arg0: i32, %arg1: i32, %arg2: memref<1x4x16x4xbf16, #tpu.memory_space<vmem>>, %arg3: memref<16x8xbf16, #tpu.memory_space<vmem>>, %arg4: memref<4x16xbf16, #tpu.memory_space<vmem>>, %arg5: memref<8x16xbf16, #tpu.memory_space<vmem>>, %arg6: memref<1x16xf32, #tpu.memory_space<vmem>>, %arg7: memref<4x16xbf16, #tpu.memory_space<vmem>>, %arg8: memref<8x16xbf16, #tpu.memory_space<vmem>>, %arg9: memref<1x16xf32, #tpu.memory_space<vmem>>, %arg10: memref<8x4xbf16, #tpu.memory_space<vmem>>, %arg11: memref<8x4xbf16, #tpu.memory_space<vmem>>, %arg12: memref<8x1xf32, #tpu.memory_space<vmem>>, %arg13: memref<1x4x8x16xf32, #tpu.memory_space<vmem>>) attributes {dimension_semantics = [#tpu.dimension_semantics<parallel>, #tpu.dimension_semantics<parallel>], iteration_bounds = array<i64: 2, 2>, scalar_prefetch = 0 : i64, scratch_operands = 0 : i64, tpu.core_type = #tpu.core_type<tc>, window_params = [{transform_indices = @transform_0, window_bounds = array<i64: 1, 4, 16, 4>}, {pipeline_mode = #tpu.pipeline_mode<synchronous>, transform_indices = @transform_1, window_bounds = array<i64: 16, 8>}, {pipeline_mode = #tpu.pipeline_mode<synchronous>, transform_indices = @transform_2, window_bounds = array<i64: 4, 16>}, {pipeline_mode = #tpu.pipeline_mode<synchronous>, transform_indices = @transform_3, window_bounds = array<i64: 8, 16>}, {pipeline_mode = #tpu.pipeline_mode<synchronous>, transform_indices = @transform_4, window_bounds = array<i64: 1, 16>}, {pipeline_mode = #tpu.pipeline_mode<synchronous>, transform_indices = @transform_5, window_bounds = array<i64: 4, 16>}, {pipeline_mode = #tpu.pipeline_mode<synchronous>, transform_indices = @transform_6, window_bounds = array<i64: 8, 16>}, {pipeline_mode = #tpu.pipeline_mode<synchronous>, transform_indices = @transform_7, window_bounds = array<i64: 1, 16>}, {pipeline_mode = #tpu.pipeline_mode<synchronous>, transform_indices = @transform_8, window_bounds = array<i64: 8, 4>}, {pipeline_mode = #tpu.pipeline_mode<synchronous>, transform_indices = @transform_9, window_bounds = array<i64: 8, 4>}, {pipeline_mode = #tpu.pipeline_mode<synchronous>, transform_indices = @transform_10, window_bounds = array<i64: 8, 1>}, {transform_indices = @transform_11, window_bounds = array<i64: 1, 4, 8, 16>}]} {
    %c0 = arith.constant 0 : index
    %c0_0 = arith.constant 0 : index
    %0 = vector.load %arg3[%c0, %c0_0] : memref<16x8xbf16, #tpu.memory_space<vmem>>, vector<16x8xbf16>
    %c0_1 = arith.constant 0 : index
    %c0_2 = arith.constant 0 : index
    %1 = vector.load %arg5[%c0_1, %c0_2] : memref<8x16xbf16, #tpu.memory_space<vmem>>, vector<8x16xbf16>
    %cst = arith.constant dense<0.000000e+00> : vector<16x16xf32>
    %2 = tpu.matmul %0, %1, %cst {dimension_numbers = #tpu.dot_dimension_numbers<[1], [0], [0], [1], [0, 0, 1, 1], [], []>} : vector<16x8xbf16>, vector<8x16xbf16>, vector<16x16xf32> -> vector<16x16xf32>
    %c0_3 = arith.constant 0 : index
    %c0_4 = arith.constant 0 : index
    %3 = vector.load %arg6[%c0_3, %c0_4] : memref<1x16xf32, #tpu.memory_space<vmem>>, vector<1x16xf32>
    %4 = vector.broadcast %3 : vector<1x16xf32> to vector<16x16xf32>
    %5 = arith.addf %2, %4 : vector<16x16xf32>
    %c0_5 = arith.constant 0 : index
    %c0_6 = arith.constant 0 : index
    %6 = vector.load %arg8[%c0_5, %c0_6] : memref<8x16xbf16, #tpu.memory_space<vmem>>, vector<8x16xbf16>
    %cst_7 = arith.constant dense<0.000000e+00> : vector<16x16xf32>
    %7 = tpu.matmul %0, %6, %cst_7 {dimension_numbers = #tpu.dot_dimension_numbers<[1], [0], [0], [1], [0, 0, 1, 1], [], []>} : vector<16x8xbf16>, vector<8x16xbf16>, vector<16x16xf32> -> vector<16x16xf32>
    %c0_8 = arith.constant 0 : index
    %c0_9 = arith.constant 0 : index
    %8 = vector.load %arg9[%c0_8, %c0_9] : memref<1x16xf32, #tpu.memory_space<vmem>>, vector<1x16xf32>
    %9 = vector.broadcast %8 : vector<1x16xf32> to vector<16x16xf32>
    %10 = arith.addf %7, %9 : vector<16x16xf32>
    %c0_10 = arith.constant 0 : index
    %c0_11 = arith.constant 0 : index
    %c0_12 = arith.constant 0 : index
    %c0_13 = arith.constant 0 : index
    %11 = vector.load %arg2[%c0_10, %c0_11, %c0_12, %c0_13] : memref<1x4x16x4xbf16, #tpu.memory_space<vmem>>, vector<1x1x16x4xbf16>
    %12 = vector.shape_cast %11 : vector<1x1x16x4xbf16> to vector<16x4xbf16>
    %c0_14 = arith.constant 0 : index
    %c0_15 = arith.constant 0 : index
    %13 = vector.load %arg4[%c0_14, %c0_15] : memref<4x16xbf16, #tpu.memory_space<vmem>>, vector<4x16xbf16>
    %cst_16 = arith.constant dense<0.000000e+00> : vector<16x16xf32>
    %14 = tpu.matmul %12, %13, %cst_16 {dimension_numbers = #tpu.dot_dimension_numbers<[1], [0], [0], [1], [0, 0, 1, 1], [], []>} : vector<16x4xbf16>, vector<4x16xbf16>, vector<16x16xf32> -> vector<16x16xf32>
    %15 = arith.addf %14, %5 : vector<16x16xf32>
    %cst_17 = arith.constant 2.500000e-01 : f32
    %16 = vector.broadcast %cst_17 : f32 to vector<16x16xf32>
    %17 = arith.mulf %15, %16 : vector<16x16xf32>
    %c0_18 = arith.constant 0 : index
    %c0_19 = arith.constant 0 : index
    %18 = vector.load %arg7[%c0_18, %c0_19] : memref<4x16xbf16, #tpu.memory_space<vmem>>, vector<4x16xbf16>
    %cst_20 = arith.constant dense<0.000000e+00> : vector<16x16xf32>
    %19 = tpu.matmul %12, %18, %cst_20 {dimension_numbers = #tpu.dot_dimension_numbers<[1], [0], [0], [1], [0, 0, 1, 1], [], []>} : vector<16x4xbf16>, vector<4x16xbf16>, vector<16x16xf32> -> vector<16x16xf32>
    %20 = arith.addf %19, %10 : vector<16x16xf32>
    %21 = arith.truncf %20 : vector<16x16xf32> to vector<16x16xbf16>
    %22 = arith.truncf %17 : vector<16x16xf32> to vector<16x16xbf16>
    %cst_21 = arith.constant dense<0.000000e+00> : vector<16x16xf32>
    %23 = tpu.matmul %21, %22, %cst_21 {dimension_numbers = #tpu.dot_dimension_numbers<[1], [1], [0], [0], [0, 0, 1, 0], [], []>} : vector<16x16xbf16>, vector<16x16xbf16>, vector<16x16xf32> -> vector<16x16xf32>
    %cst_22 = arith.constant dense<0xFF800000> : vector<16xf32>
    %24 = vector.multi_reduction <maximumf>, %23, %cst_22 [0] : vector<16x16xf32> to vector<16xf32>
    %25 = vector.shape_cast %24 : vector<16xf32> to vector<1x16xf32>
    %26 = vector.broadcast %25 : vector<1x16xf32> to vector<16x16xf32>
    %27 = arith.subf %23, %26 : vector<16x16xf32>
    %28 = math.exp %27 : vector<16x16xf32>
    %cst_23 = arith.constant dense<0.000000e+00> : vector<16xf32>
    %29 = vector.multi_reduction <add>, %28, %cst_23 [0] : vector<16x16xf32> to vector<16xf32>
    %30 = vector.shape_cast %29 : vector<16xf32> to vector<1x16xf32>
    %31 = tpu.reciprocal %30 {approx = true} : vector<1x16xf32> -> vector<1x16xf32>
    %32 = vector.broadcast %31 : vector<1x16xf32> to vector<16x16xf32>
    %33 = arith.mulf %28, %32 : vector<16x16xf32>
    %34 = arith.truncf %33 : vector<16x16xf32> to vector<16x16xbf16>
    %cst_24 = arith.constant dense<0.000000e+00> : vector<16x4xf32>
    %35 = tpu.matmul %34, %12, %cst_24 {dimension_numbers = #tpu.dot_dimension_numbers<[1], [0], [0], [1], [0, 0, 1, 1], [], []>} : vector<16x16xbf16>, vector<16x4xbf16>, vector<16x4xf32> -> vector<16x4xf32>
    %c0_25 = arith.constant 0 : index
    %c0_26 = arith.constant 0 : index
    %36 = vector.load %arg10[%c0_25, %c0_26] : memref<8x4xbf16, #tpu.memory_space<vmem>>, vector<8x4xbf16>
    %cst_27 = arith.constant dense<0.000000e+00> : vector<8x16xf32>
    %37 = tpu.matmul %36, %12, %cst_27 {dimension_numbers = #tpu.dot_dimension_numbers<[1], [1], [0], [0], [0, 0, 1, 0], [], []>} : vector<8x4xbf16>, vector<16x4xbf16>, vector<8x16xf32> -> vector<8x16xf32>
    %c0_28 = arith.constant 0 : index
    %c0_29 = arith.constant 0 : index
    %38 = vector.load %arg11[%c0_28, %c0_29] : memref<8x4xbf16, #tpu.memory_space<vmem>>, vector<8x4xbf16>
    %39 = arith.truncf %35 : vector<16x4xf32> to vector<16x4xbf16>
    %cst_30 = arith.constant dense<0.000000e+00> : vector<8x16xf32>
    %40 = tpu.matmul %38, %39, %cst_30 {dimension_numbers = #tpu.dot_dimension_numbers<[1], [1], [0], [0], [0, 0, 1, 0], [], []>} : vector<8x4xbf16>, vector<16x4xbf16>, vector<8x16xf32> -> vector<8x16xf32>
    %41 = arith.addf %37, %40 : vector<8x16xf32>
    %c0_31 = arith.constant 0 : index
    %c0_32 = arith.constant 0 : index
    %42 = vector.load %arg12[%c0_31, %c0_32] : memref<8x1xf32, #tpu.memory_space<vmem>>, vector<8x1xf32>
    %43 = vector.broadcast %42 : vector<8x1xf32> to vector<8x16xf32>
    %44 = arith.addf %41, %43 : vector<8x16xf32>
    %c0_33 = arith.constant 0 : index
    %c0_34 = arith.constant 0 : index
    %c0_35 = arith.constant 0 : index
    %c0_36 = arith.constant 0 : index
    %45 = vector.load %arg13[%c0_33, %c0_34, %c0_35, %c0_36] : memref<1x4x8x16xf32, #tpu.memory_space<vmem>>, vector<1x1x8x16xf32>
    %46 = vector.shape_cast %45 : vector<1x1x8x16xf32> to vector<8x16xf32>
    %47 = vector.shape_cast %44 : vector<8x16xf32> to vector<1x1x8x16xf32>
    tpu.vector_store %arg13[%c0_33, %c0_34, %c0_35, %c0_36], %47 {strides = array<i32>} : memref<1x4x8x16xf32, #tpu.memory_space<vmem>>, vector<1x1x8x16xf32>,
    %c0_37 = arith.constant 0 : index
    %c1 = arith.constant 1 : index
    %c0_38 = arith.constant 0 : index
    %c0_39 = arith.constant 0 : index
    %48 = vector.load %arg2[%c0_37, %c1, %c0_38, %c0_39] : memref<1x4x16x4xbf16, #tpu.memory_space<vmem>>, vector<1x1x16x4xbf16>
    %49 = vector.shape_cast %48 : vector<1x1x16x4xbf16> to vector<16x4xbf16>
    %c0_40 = arith.constant 0 : index
    %c0_41 = arith.constant 0 : index
    %50 = vector.load %arg4[%c0_40, %c0_41] : memref<4x16xbf16, #tpu.memory_space<vmem>>, vector<4x16xbf16>
    %cst_42 = arith.constant dense<0.000000e+00> : vector<16x16xf32>
    %51 = tpu.matmul %49, %50, %cst_42 {dimension_numbers = #tpu.dot_dimension_numbers<[1], [0], [0], [1], [0, 0, 1, 1], [], []>} : vector<16x4xbf16>, vector<4x16xbf16>, vector<16x16xf32> -> vector<16x16xf32>
    %52 = arith.addf %51, %5 : vector<16x16xf32>
    %cst_43 = arith.constant 2.500000e-01 : f32
    %53 = vector.broadcast %cst_43 : f32 to vector<16x16xf32>
    %54 = arith.mulf %52, %53 : vector<16x16xf32>
    %c0_44 = arith.constant 0 : index
    %c0_45 = arith.constant 0 : index
    %55 = vector.load %arg7[%c0_44, %c0_45] : memref<4x16xbf16, #tpu.memory_space<vmem>>, vector<4x16xbf16>
    %cst_46 = arith.constant dense<0.000000e+00> : vector<16x16xf32>
    %56 = tpu.matmul %49, %55, %cst_46 {dimension_numbers = #tpu.dot_dimension_numbers<[1], [0], [0], [1], [0, 0, 1, 1], [], []>} : vector<16x4xbf16>, vector<4x16xbf16>, vector<16x16xf32> -> vector<16x16xf32>
    %57 = arith.addf %56, %10 : vector<16x16xf32>
    %58 = arith.truncf %57 : vector<16x16xf32> to vector<16x16xbf16>
    %59 = arith.truncf %54 : vector<16x16xf32> to vector<16x16xbf16>
    %cst_47 = arith.constant dense<0.000000e+00> : vector<16x16xf32>
    %60 = tpu.matmul %58, %59, %cst_47 {dimension_numbers = #tpu.dot_dimension_numbers<[1], [1], [0], [0], [0, 0, 1, 0], [], []>} : vector<16x16xbf16>, vector<16x16xbf16>, vector<16x16xf32> -> vector<16x16xf32>
    %cst_48 = arith.constant dense<0xFF800000> : vector<16xf32>
    %61 = vector.multi_reduction <maximumf>, %60, %cst_48 [0] : vector<16x16xf32> to vector<16xf32>
    %62 = vector.shape_cast %61 : vector<16xf32> to vector<1x16xf32>
    %63 = vector.broadcast %62 : vector<1x16xf32> to vector<16x16xf32>
    %64 = arith.subf %60, %63 : vector<16x16xf32>
    %65 = math.exp %64 : vector<16x16xf32>
    %cst_49 = arith.constant dense<0.000000e+00> : vector<16xf32>
    %66 = vector.multi_reduction <add>, %65, %cst_49 [0] : vector<16x16xf32> to vector<16xf32>
    %67 = vector.shape_cast %66 : vector<16xf32> to vector<1x16xf32>
    %68 = tpu.reciprocal %67 {approx = true} : vector<1x16xf32> -> vector<1x16xf32>
    %69 = vector.broadcast %68 : vector<1x16xf32> to vector<16x16xf32>
    %70 = arith.mulf %65, %69 : vector<16x16xf32>
    %71 = arith.truncf %70 : vector<16x16xf32> to vector<16x16xbf16>
    %cst_50 = arith.constant dense<0.000000e+00> : vector<16x4xf32>
    %72 = tpu.matmul %71, %49, %cst_50 {dimension_numbers = #tpu.dot_dimension_numbers<[1], [0], [0], [1], [0, 0, 1, 1], [], []>} : vector<16x16xbf16>, vector<16x4xbf16>, vector<16x4xf32> -> vector<16x4xf32>
    %c0_51 = arith.constant 0 : index
    %c0_52 = arith.constant 0 : index
    %73 = vector.load %arg10[%c0_51, %c0_52] : memref<8x4xbf16, #tpu.memory_space<vmem>>, vector<8x4xbf16>
    %cst_53 = arith.constant dense<0.000000e+00> : vector<8x16xf32>
    %74 = tpu.matmul %73, %49, %cst_53 {dimension_numbers = #tpu.dot_dimension_numbers<[1], [1], [0], [0], [0, 0, 1, 0], [], []>} : vector<8x4xbf16>, vector<16x4xbf16>, vector<8x16xf32> -> vector<8x16xf32>
    %c0_54 = arith.constant 0 : index
    %c0_55 = arith.constant 0 : index
    %75 = vector.load %arg11[%c0_54, %c0_55] : memref<8x4xbf16, #tpu.memory_space<vmem>>, vector<8x4xbf16>
    %76 = arith.truncf %72 : vector<16x4xf32> to vector<16x4xbf16>
    %cst_56 = arith.constant dense<0.000000e+00> : vector<8x16xf32>
    %77 = tpu.matmul %75, %76, %cst_56 {dimension_numbers = #tpu.dot_dimension_numbers<[1], [1], [0], [0], [0, 0, 1, 0], [], []>} : vector<8x4xbf16>, vector<16x4xbf16>, vector<8x16xf32> -> vector<8x16xf32>
    %78 = arith.addf %74, %77 : vector<8x16xf32>
    %c0_57 = arith.constant 0 : index
    %c0_58 = arith.constant 0 : index
    %79 = vector.load %arg12[%c0_57, %c0_58] : memref<8x1xf32, #tpu.memory_space<vmem>>, vector<8x1xf32>
    %80 = vector.broadcast %79 : vector<8x1xf32> to vector<8x16xf32>
    %81 = arith.addf %78, %80 : vector<8x16xf32>
    %c0_59 = arith.constant 0 : index
    %c1_60 = arith.constant 1 : index
    %c0_61 = arith.constant 0 : index
    %c0_62 = arith.constant 0 : index
    %82 = vector.load %arg13[%c0_59, %c1_60, %c0_61, %c0_62] : memref<1x4x8x16xf32, #tpu.memory_space<vmem>>, vector<1x1x8x16xf32>
    %83 = vector.shape_cast %82 : vector<1x1x8x16xf32> to vector<8x16xf32>
    %84 = vector.shape_cast %81 : vector<8x16xf32> to vector<1x1x8x16xf32>
    tpu.vector_store %arg13[%c0_59, %c1_60, %c0_61, %c0_62], %84 {strides = array<i32>} : memref<1x4x8x16xf32, #tpu.memory_space<vmem>>, vector<1x1x8x16xf32>,
    %c0_63 = arith.constant 0 : index
    %c2 = arith.constant 2 : index
    %c0_64 = arith.constant 0 : index
    %c0_65 = arith.constant 0 : index
    %85 = vector.load %arg2[%c0_63, %c2, %c0_64, %c0_65] : memref<1x4x16x4xbf16, #tpu.memory_space<vmem>>, vector<1x1x16x4xbf16>
    %86 = vector.shape_cast %85 : vector<1x1x16x4xbf16> to vector<16x4xbf16>
    %c0_66 = arith.constant 0 : index
    %c0_67 = arith.constant 0 : index
    %87 = vector.load %arg4[%c0_66, %c0_67] : memref<4x16xbf16, #tpu.memory_space<vmem>>, vector<4x16xbf16>
    %cst_68 = arith.constant dense<0.000000e+00> : vector<16x16xf32>
    %88 = tpu.matmul %86, %87, %cst_68 {dimension_numbers = #tpu.dot_dimension_numbers<[1], [0], [0], [1], [0, 0, 1, 1], [], []>} : vector<16x4xbf16>, vector<4x16xbf16>, vector<16x16xf32> -> vector<16x16xf32>
    %89 = arith.addf %88, %5 : vector<16x16xf32>
    %cst_69 = arith.constant 2.500000e-01 : f32
    %90 = vector.broadcast %cst_69 : f32 to vector<16x16xf32>
    %91 = arith.mulf %89, %90 : vector<16x16xf32>
    %c0_70 = arith.constant 0 : index
    %c0_71 = arith.constant 0 : index
    %92 = vector.load %arg7[%c0_70, %c0_71] : memref<4x16xbf16, #tpu.memory_space<vmem>>, vector<4x16xbf16>
    %cst_72 = arith.constant dense<0.000000e+00> : vector<16x16xf32>
    %93 = tpu.matmul %86, %92, %cst_72 {dimension_numbers = #tpu.dot_dimension_numbers<[1], [0], [0], [1], [0, 0, 1, 1], [], []>} : vector<16x4xbf16>, vector<4x16xbf16>, vector<16x16xf32> -> vector<16x16xf32>
    %94 = arith.addf %93, %10 : vector<16x16xf32>
    %95 = arith.truncf %94 : vector<16x16xf32> to vector<16x16xbf16>
    %96 = arith.truncf %91 : vector<16x16xf32> to vector<16x16xbf16>
    %cst_73 = arith.constant dense<0.000000e+00> : vector<16x16xf32>
    %97 = tpu.matmul %95, %96, %cst_73 {dimension_numbers = #tpu.dot_dimension_numbers<[1], [1], [0], [0], [0, 0, 1, 0], [], []>} : vector<16x16xbf16>, vector<16x16xbf16>, vector<16x16xf32> -> vector<16x16xf32>
    %cst_74 = arith.constant dense<0xFF800000> : vector<16xf32>
    %98 = vector.multi_reduction <maximumf>, %97, %cst_74 [0] : vector<16x16xf32> to vector<16xf32>
    %99 = vector.shape_cast %98 : vector<16xf32> to vector<1x16xf32>
    %100 = vector.broadcast %99 : vector<1x16xf32> to vector<16x16xf32>
    %101 = arith.subf %97, %100 : vector<16x16xf32>
    %102 = math.exp %101 : vector<16x16xf32>
    %cst_75 = arith.constant dense<0.000000e+00> : vector<16xf32>
    %103 = vector.multi_reduction <add>, %102, %cst_75 [0] : vector<16x16xf32> to vector<16xf32>
    %104 = vector.shape_cast %103 : vector<16xf32> to vector<1x16xf32>
    %105 = tpu.reciprocal %104 {approx = true} : vector<1x16xf32> -> vector<1x16xf32>
    %106 = vector.broadcast %105 : vector<1x16xf32> to vector<16x16xf32>
    %107 = arith.mulf %102, %106 : vector<16x16xf32>
    %108 = arith.truncf %107 : vector<16x16xf32> to vector<16x16xbf16>
    %cst_76 = arith.constant dense<0.000000e+00> : vector<16x4xf32>
    %109 = tpu.matmul %108, %86, %cst_76 {dimension_numbers = #tpu.dot_dimension_numbers<[1], [0], [0], [1], [0, 0, 1, 1], [], []>} : vector<16x16xbf16>, vector<16x4xbf16>, vector<16x4xf32> -> vector<16x4xf32>
    %c0_77 = arith.constant 0 : index
    %c0_78 = arith.constant 0 : index
    %110 = vector.load %arg10[%c0_77, %c0_78] : memref<8x4xbf16, #tpu.memory_space<vmem>>, vector<8x4xbf16>
    %cst_79 = arith.constant dense<0.000000e+00> : vector<8x16xf32>
    %111 = tpu.matmul %110, %86, %cst_79 {dimension_numbers = #tpu.dot_dimension_numbers<[1], [1], [0], [0], [0, 0, 1, 0], [], []>} : vector<8x4xbf16>, vector<16x4xbf16>, vector<8x16xf32> -> vector<8x16xf32>
    %c0_80 = arith.constant 0 : index
    %c0_81 = arith.constant 0 : index
    %112 = vector.load %arg11[%c0_80, %c0_81] : memref<8x4xbf16, #tpu.memory_space<vmem>>, vector<8x4xbf16>
    %113 = arith.truncf %109 : vector<16x4xf32> to vector<16x4xbf16>
    %cst_82 = arith.constant dense<0.000000e+00> : vector<8x16xf32>
    %114 = tpu.matmul %112, %113, %cst_82 {dimension_numbers = #tpu.dot_dimension_numbers<[1], [1], [0], [0], [0, 0, 1, 0], [], []>} : vector<8x4xbf16>, vector<16x4xbf16>, vector<8x16xf32> -> vector<8x16xf32>
    %115 = arith.addf %111, %114 : vector<8x16xf32>
    %c0_83 = arith.constant 0 : index
    %c0_84 = arith.constant 0 : index
    %116 = vector.load %arg12[%c0_83, %c0_84] : memref<8x1xf32, #tpu.memory_space<vmem>>, vector<8x1xf32>
    %117 = vector.broadcast %116 : vector<8x1xf32> to vector<8x16xf32>
    %118 = arith.addf %115, %117 : vector<8x16xf32>
    %c0_85 = arith.constant 0 : index
    %c2_86 = arith.constant 2 : index
    %c0_87 = arith.constant 0 : index
    %c0_88 = arith.constant 0 : index
    %119 = vector.load %arg13[%c0_85, %c2_86, %c0_87, %c0_88] : memref<1x4x8x16xf32, #tpu.memory_space<vmem>>, vector<1x1x8x16xf32>
    %120 = vector.shape_cast %119 : vector<1x1x8x16xf32> to vector<8x16xf32>
    %121 = vector.shape_cast %118 : vector<8x16xf32> to vector<1x1x8x16xf32>
    tpu.vector_store %arg13[%c0_85, %c2_86, %c0_87, %c0_88], %121 {strides = array<i32>} : memref<1x4x8x16xf32, #tpu.memory_space<vmem>>, vector<1x1x8x16xf32>,
    %c0_89 = arith.constant 0 : index
    %c3 = arith.constant 3 : index
    %c0_90 = arith.constant 0 : index
    %c0_91 = arith.constant 0 : index
    %122 = vector.load %arg2[%c0_89, %c3, %c0_90, %c0_91] : memref<1x4x16x4xbf16, #tpu.memory_space<vmem>>, vector<1x1x16x4xbf16>
    %123 = vector.shape_cast %122 : vector<1x1x16x4xbf16> to vector<16x4xbf16>
    %c0_92 = arith.constant 0 : index
    %c0_93 = arith.constant 0 : index
    %124 = vector.load %arg4[%c0_92, %c0_93] : memref<4x16xbf16, #tpu.memory_space<vmem>>, vector<4x16xbf16>
    %cst_94 = arith.constant dense<0.000000e+00> : vector<16x16xf32>
    %125 = tpu.matmul %123, %124, %cst_94 {dimension_numbers = #tpu.dot_dimension_numbers<[1], [0], [0], [1], [0, 0, 1, 1], [], []>} : vector<16x4xbf16>, vector<4x16xbf16>, vector<16x16xf32> -> vector<16x16xf32>
    %126 = arith.addf %125, %5 : vector<16x16xf32>
    %cst_95 = arith.constant 2.500000e-01 : f32
    %127 = vector.broadcast %cst_95 : f32 to vector<16x16xf32>
    %128 = arith.mulf %126, %127 : vector<16x16xf32>
    %c0_96 = arith.constant 0 : index
    %c0_97 = arith.constant 0 : index
    %129 = vector.load %arg7[%c0_96, %c0_97] : memref<4x16xbf16, #tpu.memory_space<vmem>>, vector<4x16xbf16>
    %cst_98 = arith.constant dense<0.000000e+00> : vector<16x16xf32>
    %130 = tpu.matmul %123, %129, %cst_98 {dimension_numbers = #tpu.dot_dimension_numbers<[1], [0], [0], [1], [0, 0, 1, 1], [], []>} : vector<16x4xbf16>, vector<4x16xbf16>, vector<16x16xf32> -> vector<16x16xf32>
    %131 = arith.addf %130, %10 : vector<16x16xf32>
    %132 = arith.truncf %131 : vector<16x16xf32> to vector<16x16xbf16>
    %133 = arith.truncf %128 : vector<16x16xf32> to vector<16x16xbf16>
    %cst_99 = arith.constant dense<0.000000e+00> : vector<16x16xf32>
    %134 = tpu.matmul %132, %133, %cst_99 {dimension_numbers = #tpu.dot_dimension_numbers<[1], [1], [0], [0], [0, 0, 1, 0], [], []>} : vector<16x16xbf16>, vector<16x16xbf16>, vector<16x16xf32> -> vector<16x16xf32>
    %cst_100 = arith.constant dense<0xFF800000> : vector<16xf32>
    %135 = vector.multi_reduction <maximumf>, %134, %cst_100 [0] : vector<16x16xf32> to vector<16xf32>
    %136 = vector.shape_cast %135 : vector<16xf32> to vector<1x16xf32>
    %137 = vector.broadcast %136 : vector<1x16xf32> to vector<16x16xf32>
    %138 = arith.subf %134, %137 : vector<16x16xf32>
    %139 = math.exp %138 : vector<16x16xf32>
    %cst_101 = arith.constant dense<0.000000e+00> : vector<16xf32>
    %140 = vector.multi_reduction <add>, %139, %cst_101 [0] : vector<16x16xf32> to vector<16xf32>
    %141 = vector.shape_cast %140 : vector<16xf32> to vector<1x16xf32>
    %142 = tpu.reciprocal %141 {approx = true} : vector<1x16xf32> -> vector<1x16xf32>
    %143 = vector.broadcast %142 : vector<1x16xf32> to vector<16x16xf32>
    %144 = arith.mulf %139, %143 : vector<16x16xf32>
    %145 = arith.truncf %144 : vector<16x16xf32> to vector<16x16xbf16>
    %cst_102 = arith.constant dense<0.000000e+00> : vector<16x4xf32>
    %146 = tpu.matmul %145, %123, %cst_102 {dimension_numbers = #tpu.dot_dimension_numbers<[1], [0], [0], [1], [0, 0, 1, 1], [], []>} : vector<16x16xbf16>, vector<16x4xbf16>, vector<16x4xf32> -> vector<16x4xf32>
    %c0_103 = arith.constant 0 : index
    %c0_104 = arith.constant 0 : index
    %147 = vector.load %arg10[%c0_103, %c0_104] : memref<8x4xbf16, #tpu.memory_space<vmem>>, vector<8x4xbf16>
    %cst_105 = arith.constant dense<0.000000e+00> : vector<8x16xf32>
    %148 = tpu.matmul %147, %123, %cst_105 {dimension_numbers = #tpu.dot_dimension_numbers<[1], [1], [0], [0], [0, 0, 1, 0], [], []>} : vector<8x4xbf16>, vector<16x4xbf16>, vector<8x16xf32> -> vector<8x16xf32>
    %c0_106 = arith.constant 0 : index
    %c0_107 = arith.constant 0 : index
    %149 = vector.load %arg11[%c0_106, %c0_107] : memref<8x4xbf16, #tpu.memory_space<vmem>>, vector<8x4xbf16>
    %150 = arith.truncf %146 : vector<16x4xf32> to vector<16x4xbf16>
    %cst_108 = arith.constant dense<0.000000e+00> : vector<8x16xf32>
    %151 = tpu.matmul %149, %150, %cst_108 {dimension_numbers = #tpu.dot_dimension_numbers<[1], [1], [0], [0], [0, 0, 1, 0], [], []>} : vector<8x4xbf16>, vector<16x4xbf16>, vector<8x16xf32> -> vector<8x16xf32>
    %152 = arith.addf %148, %151 : vector<8x16xf32>
    %c0_109 = arith.constant 0 : index
    %c0_110 = arith.constant 0 : index
    %153 = vector.load %arg12[%c0_109, %c0_110] : memref<8x1xf32, #tpu.memory_space<vmem>>, vector<8x1xf32>
    %154 = vector.broadcast %153 : vector<8x1xf32> to vector<8x16xf32>
    %155 = arith.addf %152, %154 : vector<8x16xf32>
    %c0_111 = arith.constant 0 : index
    %c3_112 = arith.constant 3 : index
    %c0_113 = arith.constant 0 : index
    %c0_114 = arith.constant 0 : index
    %156 = vector.load %arg13[%c0_111, %c3_112, %c0_113, %c0_114] : memref<1x4x8x16xf32, #tpu.memory_space<vmem>>, vector<1x1x8x16xf32>
    %157 = vector.shape_cast %156 : vector<1x1x8x16xf32> to vector<8x16xf32>
    %158 = vector.shape_cast %155 : vector<8x16xf32> to vector<1x1x8x16xf32>
    tpu.vector_store %arg13[%c0_111, %c3_112, %c0_113, %c0_114], %158 {strides = array<i32>} : memref<1x4x8x16xf32, #tpu.memory_space<vmem>>, vector<1x1x8x16xf32>,
    return
  }
  func.func @transform_0(%arg0: i32, %arg1: i32) -> (i32, i32, i32, i32) {
    %c0_i32 = arith.constant 0 : i32
    %c0_i32_0 = arith.constant 0 : i32
    %c0_i32_1 = arith.constant 0 : i32
    return %arg0, %arg1, %c0_i32, %c0_i32_0 : i32, i32, i32, i32
  }
  func.func @transform_1(%arg0: i32, %arg1: i32) -> (i32, i32) {
    %c0_i32 = arith.constant 0 : i32
    %c0_i32_0 = arith.constant 0 : i32
    %c0_i32_1 = arith.constant 0 : i32
    return %c0_i32, %c0_i32_0 : i32, i32
  }
  func.func @transform_2(%arg0: i32, %arg1: i32) -> (i32, i32) {
    %c0_i32 = arith.constant 0 : i32
    %c0_i32_0 = arith.constant 0 : i32
    %c0_i32_1 = arith.constant 0 : i32
    return %c0_i32, %c0_i32_0 : i32, i32
  }
  func.func @transform_3(%arg0: i32, %arg1: i32) -> (i32, i32) {
    %c0_i32 = arith.constant 0 : i32
    %c0_i32_0 = arith.constant 0 : i32
    %c0_i32_1 = arith.constant 0 : i32
    return %c0_i32, %c0_i32_0 : i32, i32
  }
  func.func @transform_4(%arg0: i32, %arg1: i32) -> (i32, i32) {
    %c0_i32 = arith.constant 0 : i32
    %c0_i32_0 = arith.constant 0 : i32
    %c0_i32_1 = arith.constant 0 : i32
    return %c0_i32, %c0_i32_0 : i32, i32
  }
  func.func @transform_5(%arg0: i32, %arg1: i32) -> (i32, i32) {
    %c0_i32 = arith.constant 0 : i32
    %c0_i32_0 = arith.constant 0 : i32
    %c0_i32_1 = arith.constant 0 : i32
    return %c0_i32, %c0_i32_0 : i32, i32
  }
  func.func @transform_6(%arg0: i32, %arg1: i32) -> (i32, i32) {
    %c0_i32 = arith.constant 0 : i32
    %c0_i32_0 = arith.constant 0 : i32
    %c0_i32_1 = arith.constant 0 : i32
    return %c0_i32, %c0_i32_0 : i32, i32
  }
  func.func @transform_7(%arg0: i32, %arg1: i32) -> (i32, i32) {
    %c0_i32 = arith.constant 0 : i32
    %c0_i32_0 = arith.constant 0 : i32
    %c0_i32_1 = arith.constant 0 : i32
    return %c0_i32, %c0_i32_0 : i32, i32
  }
  func.func @transform_8(%arg0: i32, %arg1: i32) -> (i32, i32) {
    %c0_i32 = arith.constant 0 : i32
    %c0_i32_0 = arith.constant 0 : i32
    %c0_i32_1 = arith.constant 0 : i32
    return %c0_i32, %c0_i32_0 : i32, i32
  }
  func.func @transform_9(%arg0: i32, %arg1: i32) -> (i32, i32) {
    %c0_i32 = arith.constant 0 : i32
    %c0_i32_0 = arith.constant 0 : i32
    %c0_i32_1 = arith.constant 0 : i32
    return %c0_i32, %c0_i32_0 : i32, i32
  }
  func.func @transform_10(%arg0: i32, %arg1: i32) -> (i32, i32) {
    %c0_i32 = arith.constant 0 : i32
    %c0_i32_0 = arith.constant 0 : i32
    %c0_i32_1 = arith.constant 0 : i32
    return %c0_i32, %c0_i32_0 : i32, i32
  }
  func.func @transform_11(%arg0: i32, %arg1: i32) -> (i32, i32, i32, i32) {
    %c0_i32 = arith.constant 0 : i32
    %c0_i32_0 = arith.constant 0 : i32
    %c0_i32_1 = arith.constant 0 : i32
    return %arg0, %arg1, %c0_i32, %c0_i32_0 : i32, i32, i32, i32
  }
}

</mosaic_0001>

<llo_original>
// kernel: tpu_custom_call.1
$region0: #{tpu_custom_call.1}
  #allocation0 [shape = 'u32[]', space=smem, size = 0x4, offset = 0x4, fixed_abs, tag = 'smem constant byte address 0x4 - core index']
  #allocation1 [shape = 'u32[144,128]{1,0:T(1,128)}', space=vmem, size = 0x12000, scoped, tag = 'internal scratch']
  %s0 = inlined_call_operand.vmem [shape: bf16[2,8,16,4], index: 0, kind: input, shape index: {}]
  %s1 = inlined_call_operand.vmem [shape: bf16[16,8], index: 1, kind: input, shape index: {}]
  %s2 = inlined_call_operand.vmem [shape: bf16[4,16], index: 2, kind: input, shape index: {}]
  %s3 = inlined_call_operand.vmem [shape: bf16[8,16], index: 3, kind: input, shape index: {}]
  %s4 = inlined_call_operand.vmem [shape: f32[1,16], index: 4, kind: input, shape index: {}]
  %s5 = inlined_call_operand.vmem [shape: bf16[4,16], index: 5, kind: input, shape index: {}]
  %s6 = inlined_call_operand.vmem [shape: bf16[8,16], index: 6, kind: input, shape index: {}]
  %s7 = inlined_call_operand.vmem [shape: f32[1,16], index: 7, kind: input, shape index: {}]
  %s8 = inlined_call_operand.vmem [shape: bf16[8,4], index: 8, kind: input, shape index: {}]
  %s9 = inlined_call_operand.vmem [shape: bf16[8,4], index: 9, kind: input, shape index: {}]
  %s10 = inlined_call_operand.vmem [shape: f32[8,1], index: 10, kind: input, shape index: {}]
  %s11 = inlined_call_operand.hbm [shape: f32[2,8,8,16], index: 11, kind: output, shape index: {}]
  %s12 = sld [smem:[#allocation0]]
  $region77: #{tpu_custom_call.1} parent=0
    _
  %s14 = ssub.s32 1, %s12
  %s15 = scalar_select 0, %s14, %s12
  $region1: #{tpu_custom_call.1} parent=0
    #allocation2 [shape = 'u8[32768]{0}', space=vmem, size = 0x8000, scoped, tag = 'output window, operand 0']
    #allocation3 [shape = 's32[2]{0}', space=sflag, size = 0x8, scoped, tag = 'scoped memory for tpu_custom_call.1']
    %16 = vsyncpa [#allocation3], 0
    %s17 = scalar_lea.sflag [#allocation3], 1
    %18 = vsyncpa %s17, 0
    loop: start=0, step=1, limit=6
    $region2: #{tpu_custom_call.1} parent=1 // loop_pre_header
      _
    $region3: #{tpu_custom_call.1} parent=1 // loop_header
      %s20 = sphi 0, %s24
      %p21 = scmp.ge.s32.totalorder %s20, 6
      %s27 = sphi 0, %s39
      %s28 = sphi 0, %s35
      %s29 = sphi 0, %s27
      %s30 = sphi 0, %s28
      %s31 = sphi 0, %s29
      %s32 = sphi 0, %s30
      %s44 = sphi 0, %s46
      %s47 = sphi 0, %s44
      %s48 = sphi 0, %s47
      %s64 = sphi 0, %s48
      %s68 = sphi 0, %s68
      %s70 = sphi 0, %s68
      %s71 = sphi 0, %s70
      %s85 = sphi 0, %s71
      %s89 = sphi 0, %s89
      %s91 = sphi 0, %s89
      %s92 = sphi 0, %s91
      %s106 = sphi 0, %s92
      %s110 = sphi 0, %s110
      %s112 = sphi 0, %s110
      %s113 = sphi 0, %s112
      %s127 = sphi 0, %s113
      %s131 = sphi 0, %s131
      %s133 = sphi 0, %s131
      %s134 = sphi 0, %s133
      %s148 = sphi 0, %s134
      %s152 = sphi 0, %s152
      %s154 = sphi 0, %s152
      %s155 = sphi 0, %s154
      %s169 = sphi 0, %s155
      %s173 = sphi 0, %s173
      %s175 = sphi 0, %s173
      %s176 = sphi 0, %s175
      %s190 = sphi 0, %s176
      %s194 = sphi 0, %s194
      %s196 = sphi 0, %s194
      %s197 = sphi 0, %s196
      %s211 = sphi 0, %s197
      %s215 = sphi 0, %s215
      %s217 = sphi 0, %s215
      %s218 = sphi 0, %s217
      %s232 = sphi 0, %s218
      %s236 = sphi 0, %s236
      %s238 = sphi 0, %s236
      %s239 = sphi 0, %s238
      %s253 = sphi 0, %s239
      %s257 = sphi 0, %s257
      %s259 = sphi 0, %s257
      %s260 = sphi 0, %s259
      %s274 = sphi 0, %s260
      %s282 = sphi 0, %s284
      %s285 = sphi 0, %s282
      %s286 = sphi 0, %s285
      %s302 = sphi 0, %s286
    $region4: #{tpu_custom_call.1} parent=1 // loop_header_branch
      %23 = sbr.rel (%p21) target = $region8
    $region5: #{tpu_custom_call.1} parent=1 // loop_body
      %s25 = ssub.s32 %s20, 1
      %s26 = ssub.s32 %s20, 2
      %s33 = sadd.s32 1, %s28
      %p34 = scmp.ge.s32.totalorder %s33, 2
      %s35 = scalar_select %p34, 0, %s33
      %s36 = sadd.s32 1, %s27
      %s37 = scalar_select %p34, %s36, %s27
      %p38 = scmp.ge.s32.totalorder %s37, 2
      %s39 = scalar_select %p38, 0, %s37
      %s40 = ssub.s32 %s27, %s39
      %s41 = ssub.s32 %s28, %s35
      %s42 = sor.u32 %s40, %s41
      %p43 = scmp.eq.s32.totalorder %s42, 0
      %s45 = sadd.s32 %s44, 1
      %s46 = scalar_select %p43, %s44, %s45
      %p49 = pneg %p43
      %p50 = scmp.eq.s32.totalorder %s20, 3
      %p51 = por %p49, %p50
      %p52 = scmp.ne.s32.totalorder %s44, %s47
      %p53 = scmp.eq.s32.totalorder %s20, 0
      %p54 = por %p52, %p53
      %p55 = scmp.ne.s32.totalorder %s44, %s47
      %p56 = scmp.eq.s32.totalorder %s25, 3
      %p57 = por %p55, %p56
      %p58 = scmp.ne.s32.totalorder %s47, %s48
      %p59 = scmp.eq.s32.totalorder %s25, 0
      %p60 = por %p58, %p59
      %p61 = scmp.ne.s32.totalorder %s47, %s48
      %p62 = scmp.eq.s32.totalorder %s26, 3
      %p63 = por %p61, %p62
      %p65 = scmp.ne.s32.totalorder %s48, %s64
      %p66 = scmp.eq.s32.totalorder %s26, 0
      %p67 = por %p65, %p66
      %s69 = sadd.s32 %s68, 1
      %p72 = scmp.eq.s32.totalorder %s20, 3
      %p73 = scmp.ne.s32.totalorder %s68, %s70
      %p74 = scmp.eq.s32.totalorder %s20, 0
      %p75 = por %p73, %p74
      %p76 = scmp.ne.s32.totalorder %s68, %s70
      %p77 = scmp.eq.s32.totalorder %s25, 3
      %p78 = por %p76, %p77
      %p79 = scmp.ne.s32.totalorder %s70, %s71
      %p80 = scmp.eq.s32.totalorder %s25, 0
      %p81 = por %p79, %p80
      %p82 = scmp.ne.s32.totalorder %s70, %s71
      %p83 = scmp.eq.s32.totalorder %s26, 3
      %p84 = por %p82, %p83
      %p86 = scmp.ne.s32.totalorder %s71, %s85
      %p87 = scmp.eq.s32.totalorder %s26, 0
      %p88 = por %p86, %p87
      %s90 = sadd.s32 %s89, 1
      %p93 = scmp.eq.s32.totalorder %s20, 3
      %p94 = scmp.ne.s32.totalorder %s89, %s91
      %p95 = scmp.eq.s32.totalorder %s20, 0
      %p96 = por %p94, %p95
      %p97 = scmp.ne.s32.totalorder %s89, %s91
      %p98 = scmp.eq.s32.totalorder %s25, 3
      %p99 = por %p97, %p98
      %p100 = scmp.ne.s32.totalorder %s91, %s92
      %p101 = scmp.eq.s32.totalorder %s25, 0
      %p102 = por %p100, %p101
      %p103 = scmp.ne.s32.totalorder %s91, %s92
      %p104 = scmp.eq.s32.totalorder %s26, 3
      %p105 = por %p103, %p104
      %p107 = scmp.ne.s32.totalorder %s92, %s106
      %p108 = scmp.eq.s32.totalorder %s26, 0
      %p109 = por %p107, %p108
      %s111 = sadd.s32 %s110, 1
      %p114 = scmp.eq.s32.totalorder %s20, 3
      %p115 = scmp.ne.s32.totalorder %s110, %s112
      %p116 = scmp.eq.s32.totalorder %s20, 0
      %p117 = por %p115, %p116
      %p118 = scmp.ne.s32.totalorder %s110, %s112
      %p119 = scmp.eq.s32.totalorder %s25, 3
      %p120 = por %p118, %p119
      %p121 = scmp.ne.s32.totalorder %s112, %s113
      %p122 = scmp.eq.s32.totalorder %s25, 0
      %p123 = por %p121, %p122
      %p124 = scmp.ne.s32.totalorder %s112, %s113
      %p125 = scmp.eq.s32.totalorder %s26, 3
      %p126 = por %p124, %p125
      %p128 = scmp.ne.s32.totalorder %s113, %s127
      %p129 = scmp.eq.s32.totalorder %s26, 0
      %p130 = por %p128, %p129
      %s132 = sadd.s32 %s131, 1
      %p135 = scmp.eq.s32.totalorder %s20, 3
      %p136 = scmp.ne.s32.totalorder %s131, %s133
      %p137 = scmp.eq.s32.totalorder %s20, 0
      %p138 = por %p136, %p137
      %p139 = scmp.ne.s32.totalorder %s131, %s133
      %p140 = scmp.eq.s32.totalorder %s25, 3
      %p141 = por %p139, %p140
      %p142 = scmp.ne.s32.totalorder %s133, %s134
      %p143 = scmp.eq.s32.totalorder %s25, 0
      %p144 = por %p142, %p143
      %p145 = scmp.ne.s32.totalorder %s133, %s134
      %p146 = scmp.eq.s32.totalorder %s26, 3
      %p147 = por %p145, %p146
      %p149 = scmp.ne.s32.totalorder %s134, %s148
      %p150 = scmp.eq.s32.totalorder %s26, 0
      %p151 = por %p149, %p150
      %s153 = sadd.s32 %s152, 1
      %p156 = scmp.eq.s32.totalorder %s20, 3
      %p157 = scmp.ne.s32.totalorder %s152, %s154
      %p158 = scmp.eq.s32.totalorder %s20, 0
      %p159 = por %p157, %p158
      %p160 = scmp.ne.s32.totalorder %s152, %s154
      %p161 = scmp.eq.s32.totalorder %s25, 3
      %p162 = por %p160, %p161
      %p163 = scmp.ne.s32.totalorder %s154, %s155
      %p164 = scmp.eq.s32.totalorder %s25, 0
      %p165 = por %p163, %p164
      %p166 = scmp.ne.s32.totalorder %s154, %s155
      %p167 = scmp.eq.s32.totalorder %s26, 3
      %p168 = por %p166, %p167
      %p170 = scmp.ne.s32.totalorder %s155, %s169
      %p171 = scmp.eq.s32.totalorder %s26, 0
      %p172 = por %p170, %p171
      %s174 = sadd.s32 %s173, 1
      %p177 = scmp.eq.s32.totalorder %s20, 3
      %p178 = scmp.ne.s32.totalorder %s173, %s175
      %p179 = scmp.eq.s32.totalorder %s20, 0
      %p180 = por %p178, %p179
      %p181 = scmp.ne.s32.totalorder %s173, %s175
      %p182 = scmp.eq.s32.totalorder %s25, 3
      %p183 = por %p181, %p182
      %p184 = scmp.ne.s32.totalorder %s175, %s176
      %p185 = scmp.eq.s32.totalorder %s25, 0
      %p186 = por %p184, %p185
      %p187 = scmp.ne.s32.totalorder %s175, %s176
      %p188 = scmp.eq.s32.totalorder %s26, 3
      %p189 = por %p187, %p188
      %p191 = scmp.ne.s32.totalorder %s176, %s190
      %p192 = scmp.eq.s32.totalorder %s26, 0
      %p193 = por %p191, %p192
      %s195 = sadd.s32 %s194, 1
      %p198 = scmp.eq.s32.totalorder %s20, 3
      %p199 = scmp.ne.s32.totalorder %s194, %s196
      %p200 = scmp.eq.s32.totalorder %s20, 0
      %p201 = por %p199, %p200
      %p202 = scmp.ne.s32.totalorder %s194, %s196
      %p203 = scmp.eq.s32.totalorder %s25, 3
      %p204 = por %p202, %p203
      %p205 = scmp.ne.s32.totalorder %s196, %s197
      %p206 = scmp.eq.s32.totalorder %s25, 0
      %p207 = por %p205, %p206
      %p208 = scmp.ne.s32.totalorder %s196, %s197
      %p209 = scmp.eq.s32.totalorder %s26, 3
      %p210 = por %p208, %p209
      %p212 = scmp.ne.s32.totalorder %s197, %s211
      %p213 = scmp.eq.s32.totalorder %s26, 0
      %p214 = por %p212, %p213
      %s216 = sadd.s32 %s215, 1
      %p219 = scmp.eq.s32.totalorder %s20, 3
      %p220 = scmp.ne.s32.totalorder %s215, %s217
      %p221 = scmp.eq.s32.totalorder %s20, 0
      %p222 = por %p220, %p221
      %p223 = scmp.ne.s32.totalorder %s215, %s217
      %p224 = scmp.eq.s32.totalorder %s25, 3
      %p225 = por %p223, %p224
      %p226 = scmp.ne.s32.totalorder %s217, %s218
      %p227 = scmp.eq.s32.totalorder %s25, 0
      %p228 = por %p226, %p227
      %p229 = scmp.ne.s32.totalorder %s217, %s218
      %p230 = scmp.eq.s32.totalorder %s26, 3
      %p231 = por %p229, %p230
      %p233 = scmp.ne.s32.totalorder %s218, %s232
      %p234 = scmp.eq.s32.totalorder %s26, 0
      %p235 = por %p233, %p234
      %s237 = sadd.s32 %s236, 1
      %p240 = scmp.eq.s32.totalorder %s20, 3
      %p241 = scmp.ne.s32.totalorder %s236, %s238
      %p242 = scmp.eq.s32.totalorder %s20, 0
      %p243 = por %p241, %p242
      %p244 = scmp.ne.s32.totalorder %s236, %s238
      %p245 = scmp.eq.s32.totalorder %s25, 3
      %p246 = por %p244, %p245
      %p247 = scmp.ne.s32.totalorder %s238, %s239
      %p248 = scmp.eq.s32.totalorder %s25, 0
      %p249 = por %p247, %p248
      %p250 = scmp.ne.s32.totalorder %s238, %s239
      %p251 = scmp.eq.s32.totalorder %s26, 3
      %p252 = por %p250, %p251
      %p254 = scmp.ne.s32.totalorder %s239, %s253
      %p255 = scmp.eq.s32.totalorder %s26, 0
      %p256 = por %p254, %p255
      %s258 = sadd.s32 %s257, 1
      %p261 = scmp.eq.s32.totalorder %s20, 3
      %p262 = scmp.ne.s32.totalorder %s257, %s259
      %p263 = scmp.eq.s32.totalorder %s20, 0
      %p264 = por %p262, %p263
      %p265 = scmp.ne.s32.totalorder %s257, %s259
      %p266 = scmp.eq.s32.totalorder %s25, 3
      %p267 = por %p265, %p266
      %p268 = scmp.ne.s32.totalorder %s259, %s260
      %p269 = scmp.eq.s32.totalorder %s25, 0
      %p270 = por %p268, %p269
      %p271 = scmp.ne.s32.totalorder %s259, %s260
      %p272 = scmp.eq.s32.totalorder %s26, 3
      %p273 = por %p271, %p272
      %p275 = scmp.ne.s32.totalorder %s260, %s274
      %p276 = scmp.eq.s32.totalorder %s26, 0
      %p277 = por %p275, %p276
      %s278 = ssub.s32 %s27, %s39
      %s279 = ssub.s32 %s28, %s35
      %s280 = sor.u32 %s278, %s279
      %p281 = scmp.eq.s32.totalorder %s280, 0
      %s283 = sadd.s32 %s282, 1
      %s284 = scalar_select %p281, %s282, %s283
      %p287 = pneg %p281
      %p288 = scmp.eq.s32.totalorder %s20, 3
      %p289 = por %p287, %p288
      %p290 = scmp.ne.s32.totalorder %s282, %s285
      %p291 = scmp.eq.s32.totalorder %s20, 0
      %p292 = por %p290, %p291
      %p293 = scmp.ne.s32.totalorder %s282, %s285
      %p294 = scmp.eq.s32.totalorder %s25, 3
      %p295 = por %p293, %p294
      %p296 = scmp.ne.s32.totalorder %s285, %s286
      %p297 = scmp.eq.s32.totalorder %s25, 0
      %p298 = por %p296, %p297
      %p299 = scmp.ne.s32.totalorder %s285, %s286
      %p300 = scmp.eq.s32.totalorder %s26, 3
      %p301 = por %p299, %p300
      %p303 = scmp.ne.s32.totalorder %s286, %s302
      %p304 = scmp.eq.s32.totalorder %s26, 0
      %p305 = por %p303, %p304
      %p306 = scmp.le.s32.totalorder 1, %s20
      %p307 = scmp.lt.s32.totalorder %s20, 5
      %p308 = pnand %p306, %p307
      %p309 = pneg %p308
      // Predicated region
      $region9: #{tpu_custom_call.1} parent=5 // pred_check
        _
      $region10: #{tpu_custom_call.1} parent=5 // pred_check_branch
        %311 = sbr.rel (%p308) target = $region12
      $region11: #{tpu_custom_call.1} parent=5 // pred_region
        %s312 = ssub.s32 %s20, 1
        // Predicated region
        $region13: #{tpu_custom_call.1} parent=11 // pred_check
          %p313 = pneg %p81
        $region14: #{tpu_custom_call.1} parent=11 // pred_check_branch
          %315 = sbr.rel (%p313) target = $region16
        $region15: #{tpu_custom_call.1} parent=11 // pred_region
          _
        $region16: #{tpu_custom_call.1} parent=11 // pred_fallthru
          _
        // Predicated region
        $region17: #{tpu_custom_call.1} parent=11 // pred_check
          %p316 = pneg %p102
        $region18: #{tpu_custom_call.1} parent=11 // pred_check_branch
          %318 = sbr.rel (%p316) target = $region20
        $region19: #{tpu_custom_call.1} parent=11 // pred_region
          _
        $region20: #{tpu_custom_call.1} parent=11 // pred_fallthru
          _
        // Predicated region
        $region21: #{tpu_custom_call.1} parent=11 // pred_check
          %p319 = pneg %p123
        $region22: #{tpu_custom_call.1} parent=11 // pred_check_branch
          %321 = sbr.rel (%p319) target = $region24
        $region23: #{tpu_custom_call.1} parent=11 // pred_region
          _
        $region24: #{tpu_custom_call.1} parent=11 // pred_fallthru
          _
        // Predicated region
        $region25: #{tpu_custom_call.1} parent=11 // pred_check
          %p322 = pneg %p144
        $region26: #{tpu_custom_call.1} parent=11 // pred_check_branch
          %324 = sbr.rel (%p322) target = $region28
        $region27: #{tpu_custom_call.1} parent=11 // pred_region
          _
        $region28: #{tpu_custom_call.1} parent=11 // pred_fallthru
          _
        // Predicated region
        $region29: #{tpu_custom_call.1} parent=11 // pred_check
          %p325 = pneg %p165
        $region30: #{tpu_custom_call.1} parent=11 // pred_check_branch
          %327 = sbr.rel (%p325) target = $region32
        $region31: #{tpu_custom_call.1} parent=11 // pred_region
          _
        $region32: #{tpu_custom_call.1} parent=11 // pred_fallthru
          _
        // Predicated region
        $region33: #{tpu_custom_call.1} parent=11 // pred_check
          %p328 = pneg %p186
        $region34: #{tpu_custom_call.1} parent=11 // pred_check_branch
          %330 = sbr.rel (%p328) target = $region36
        $region35: #{tpu_custom_call.1} parent=11 // pred_region
          _
        $region36: #{tpu_custom_call.1} parent=11 // pred_fallthru
          _
        // Predicated region
        $region37: #{tpu_custom_call.1} parent=11 // pred_check
          %p331 = pneg %p207
        $region38: #{tpu_custom_call.1} parent=11 // pred_check_branch
          %333 = sbr.rel (%p331) target = $region40
        $region39: #{tpu_custom_call.1} parent=11 // pred_region
          _
        $region40: #{tpu_custom_call.1} parent=11 // pred_fallthru
          _
        // Predicated region
        $region41: #{tpu_custom_call.1} parent=11 // pred_check
          %p334 = pneg %p228
        $region42: #{tpu_custom_call.1} parent=11 // pred_check_branch
          %336 = sbr.rel (%p334) target = $region44
        $region43: #{tpu_custom_call.1} parent=11 // pred_region
          _
        $region44: #{tpu_custom_call.1} parent=11 // pred_fallthru
          _
        // Predicated region
        $region45: #{tpu_custom_call.1} parent=11 // pred_check
          %p337 = pneg %p249
        $region46: #{tpu_custom_call.1} parent=11 // pred_check_branch
          %339 = sbr.rel (%p337) target = $region48
        $region47: #{tpu_custom_call.1} parent=11 // pred_region
          _
        $region48: #{tpu_custom_call.1} parent=11 // pred_fallthru
          _
        // Predicated region
        $region49: #{tpu_custom_call.1} parent=11 // pred_check
          %p340 = pneg %p270
        $region50: #{tpu_custom_call.1} parent=11 // pred_check_branch
          %342 = sbr.rel (%p340) target = $region52
        $region51: #{tpu_custom_call.1} parent=11 // pred_region
          _
        $region52: #{tpu_custom_call.1} parent=11 // pred_fallthru
          _
      $region12: #{tpu_custom_call.1} parent=5 // pred_fallthru
        _
      %p343 = scmp.lt.s32.totalorder %s20, 4
      // Predicated region
      $region53: #{tpu_custom_call.1} parent=5 // pred_check
        %p344 = pneg %p343
      $region54: #{tpu_custom_call.1} parent=5 // pred_check_branch
        %346 = sbr.rel (%p344) target = $region56
      $region55: #{tpu_custom_call.1} parent=5 // pred_region
        // Predicated region
        $region57: #{tpu_custom_call.1} parent=55 // pred_check
          %p347 = pneg %p54
        $region58: #{tpu_custom_call.1} parent=55 // pred_check_branch
          %349 = sbr.rel (%p347) target = $region60
        $region59: #{tpu_custom_call.1} parent=55 // pred_region
          %s350 = smul.u32 4, %s28
          %p351 = scmp.lt.s32.totalorder %s27, 1
          %s352 = scalar_select %p351, %s27, 1
          %p353 = scmp.lt.s32.totalorder %s350, 7
          %s354 = scalar_select %p353, %s350, 7
          %s355 = smul.addr %s354, 2
          %s356 = smul.addr %s352, 16
          %s357 = sadd.s32 %s355, %s356
          %s358 = smul.addr %s357, 4
          %s359 = scalar_lea.vmem %s0, %s358
          %s360 = smul.u32 4, %s28
        $region60: #{tpu_custom_call.1} parent=55 // pred_fallthru
          _
      $region56: #{tpu_custom_call.1} parent=5 // pred_fallthru
        _
      %p361 = scmp.le.s32.totalorder 1, %s20
      %p362 = scmp.lt.s32.totalorder %s20, 5
      %p363 = pnand %p361, %p362
      %p364 = pneg %p363
      // Predicated region
      $region61: #{tpu_custom_call.1} parent=5 // pred_check
        _
      $region62: #{tpu_custom_call.1} parent=5 // pred_check_branch
        %366 = sbr.rel (%p363) target = $region64
      $region63: #{tpu_custom_call.1} parent=5 // pred_region
        %s367 = ssub.s32 %s20, 1
        %s368 = smul.u32 4, %s30
        %p369 = scmp.lt.s32.totalorder %s29, 1
        %s370 = scalar_select %p369, %s29, 1
        %p371 = scmp.lt.s32.totalorder %s368, 7
        %s372 = scalar_select %p371, %s368, 7
        %s373 = smul.addr %s372, 2
        %s374 = smul.addr %s370, 16
        %s375 = sadd.s32 %s373, %s374
        %s376 = smul.addr %s375, 4
        %s377 = scalar_lea.vmem %s0, %s376
        %p378 = pneg %p60
        %p379 = pneg %p57
        %p380 = pneg %p81
        %p381 = pneg %p78
        %p382 = pneg %p102
        %p383 = pneg %p99
        %p384 = pneg %p123
        %p385 = pneg %p120
        %p386 = pneg %p144
        %p387 = pneg %p141
        %p388 = pneg %p165
        %p389 = pneg %p162
        %p390 = pneg %p186
        %p391 = pneg %p183
        %p392 = pneg %p207
        %p393 = pneg %p204
        %p394 = pneg %p228
        %p395 = pneg %p225
        %p396 = pneg %p249
        %p397 = pneg %p246
        %p398 = pneg %p270
        %p399 = pneg %p267
        %p400 = pneg %p298
        %p401 = pneg %p295
        %s402 = sand.u32 %s285, 1
        %s403 = scalar_lea.sflag [#allocation3], %s402
        %s404 = sand.u32 %s285, 1
        %s405 = smul.addr %s404, 32
        %s406 = scalar_lea.vmem [#allocation2], %s405
        %s407 = smul.u32 4, %s30
        %p408 = scmp.lt.s32.totalorder %s29, 1
        %s409 = scalar_select %p408, %s29, 1
        %p410 = scmp.lt.s32.totalorder %s407, 7
        %s411 = scalar_select %p410, %s407, 7
        %s412 = smul.addr %s411, 2
        %s413 = smul.addr %s409, 16
        %s414 = sadd.s32 %s412, %s413
        %s415 = smul.addr %s414, 4
        %s416 = scalar_lea.vmem %s0, %s415
        %s417 = smul.u32 4, %s30
        %s418 = smul.u32 4, %s30
        %v420 = vld [vmem:[%s1] sm:$0xf]
        %v421 = vld [vmem:[%s1 + $0x4] sm:$0xf]
        %v422 = vld [vmem:[%s3] sm:$0xf]
        %v423 = vld [vmem:[%s4] sm:$0x1]
        %v425 = vlaneseq
        %v426 = vshrl.u32 %v425, 7
        %v427 = vsub.s32 0, %v426
        %v428 = vrot.slane %v423, %v427
        %v432 = vunpack.c.l.b16 %v420
        %v433 = vunpack.c.l.b16 %v421
        %v434 = vpack.c.b16 %v433, %v432
        %vm435 = vcmask 64512
        %v437 = vsel %vm435, %v434, 0
        %vm439 = vcmask 1043456
        %v441 = vsel %vm439, %v422, 0
        %443 = vmatprep.subr.bf16.mxu0 0
        %444 = vmatpush1.bf16.msra.mxu0 %v441
        %445 = vmatprep.subr.bf16.mxu0 0
        %446 = vmatpush1.bf16.msra.mxu0 0
        %447 = vmatprep.subr.bf16.mxu0 0
        %448 = vmatpush1.bf16.msra.mxu0 0
        %449 = vmatprep.subr.bf16.mxu0 0
        %450 = vmatpush1.bf16.msra.mxu0 0
        %451 = vmatprep.subr.bf16.mxu0 0
        %452 = vmatpush1.bf16.msra.mxu0 0
        %453 = vmatprep.subr.bf16.mxu0 0
        %454 = vmatpush1.bf16.msra.mxu0 0
        %455 = vmatprep.subr.bf16.mxu0 0
        %456 = vmatpush1.bf16.msra.mxu0 0
        %457 = vmatprep.subr.bf16.mxu0 0
        %458 = vmatpush1.bf16.msra.mxu0 0
        %459 = vmatprep.subr.bf16.mxu0 0
        %460 = vmatpush1.bf16.msra.mxu0 0
        %461 = vmatprep.subr.bf16.mxu0 0
        %462 = vmatpush1.bf16.msra.mxu0 0
        %463 = vmatprep.subr.bf16.mxu0 0
        %464 = vmatpush1.bf16.msra.mxu0 0
        %465 = vmatprep.subr.bf16.mxu0 0
        %466 = vmatpush1.bf16.msra.mxu0 0
        %467 = vmatprep.subr.bf16.mxu0 0
        %468 = vmatpush1.bf16.msra.mxu0 0
        %469 = vmatprep.subr.bf16.mxu0 0
        %470 = vmatpush1.bf16.msra.mxu0 0
        %471 = vmatprep.subr.bf16.mxu0 0
        %472 = vmatpush1.bf16.msra.mxu0 0
        %473 = vmatprep.subr.bf16.mxu0 0
        %474 = vmatpush1.bf16.msra.mxu0 0
        %475 = vmatprep.mubr.bf16.mxu0 0
        %476 = vmatmul.mubr.bf16.gmra.mrb[0].mxu0 %v437
        %v477 = vpop.f32.mrb[0].mxu0
        %v478 = vadd.f32 %v428, %v477
        %v479 = vpop.f32.mrb[0].mxu0
        %v480 = vpop.f32.mrb[0].mxu0
        %v481 = vadd.f32 %v428, %v480
        %v482 = vpop.f32.mrb[0].mxu0
        %483 = vdwg.mxu0
        %v484 = vld [vmem:[%s6] sm:$0xf]
        %v485 = vld [vmem:[%s7] sm:$0x1]
        %v487 = vlaneseq
        %v488 = vshrl.u32 %v487, 7
        %v489 = vsub.s32 0, %v488
        %v490 = vrot.slane %v485, %v489
        %v493 = vsel %vm439, %v484, 0
        %495 = vmatprep.subr.bf16.mxu0 0
        %496 = vmatpush1.bf16.msra.mxu0 %v493
        %497 = vmatprep.subr.bf16.mxu0 0
        %498 = vmatpush1.bf16.msra.mxu0 0
        %499 = vmatprep.subr.bf16.mxu0 0
        %500 = vmatpush1.bf16.msra.mxu0 0
        %501 = vmatprep.subr.bf16.mxu0 0
        %502 = vmatpush1.bf16.msra.mxu0 0
        %503 = vmatprep.subr.bf16.mxu0 0
        %504 = vmatpush1.bf16.msra.mxu0 0
        %505 = vmatprep.subr.bf16.mxu0 0
        %506 = vmatpush1.bf16.msra.mxu0 0
        %507 = vmatprep.subr.bf16.mxu0 0
        %508 = vmatpush1.bf16.msra.mxu0 0
        %509 = vmatprep.subr.bf16.mxu0 0
        %510 = vmatpush1.bf16.msra.mxu0 0
        %511 = vmatprep.subr.bf16.mxu0 0
        %512 = vmatpush1.bf16.msra.mxu0 0
        %513 = vmatprep.subr.bf16.mxu0 0
        %514 = vmatpush1.bf16.msra.mxu0 0
        %515 = vmatprep.subr.bf16.mxu0 0
        %516 = vmatpush1.bf16.msra.mxu0 0
        %517 = vmatprep.subr.bf16.mxu0 0
        %518 = vmatpush1.bf16.msra.mxu0 0
        %519 = vmatprep.subr.bf16.mxu0 0
        %520 = vmatpush1.bf16.msra.mxu0 0
        %521 = vmatprep.subr.bf16.mxu0 0
        %522 = vmatpush1.bf16.msra.mxu0 0
        %523 = vmatprep.subr.bf16.mxu0 0
        %524 = vmatpush1.bf16.msra.mxu0 0
        %525 = vmatprep.subr.bf16.mxu0 0
        %526 = vmatpush1.bf16.msra.mxu0 0
        %527 = vmatprep.mubr.bf16.mxu0 0
        %528 = vmatmul.mubr.bf16.gmra.mrb[0].mxu0 %v437
        %v529 = vpop.f32.mrb[0].mxu0
        %v530 = vadd.f32 %v490, %v529
        %v531 = vpop.f32.mrb[0].mxu0
        %v532 = vpop.f32.mrb[0].mxu0
        %v533 = vadd.f32 %v490, %v532
        %v534 = vpop.f32.mrb[0].mxu0
        %535 = vdwg.mxu0
        %v536 = vld [vmem:[%s416] sm:$0xf]
        %v537 = vld [vmem:[%s416 + $0x4] sm:$0xf]
        %v538 = vld [vmem:[%s2] sm:$0x3]
        %v541 = vunpack.c.l.b16 %v536
        %v542 = vunpack.c.l.b16 %v537
        %v543 = vpack.c.b16 %v542, %v541
        %vm544 = vcmask 31744
        %v546 = vsel %vm544, %v543, 0
        %vm548 = vcmask 1041408
        %v550 = vsel %vm548, %v538, 0
        %552 = vmatprep.subr.bf16.mxu0 0
        %553 = vmatpush1.bf16.msra.mxu0 %v550
        %554 = vmatprep.subr.bf16.mxu0 0
        %555 = vmatpush1.bf16.msra.mxu0 0
        %556 = vmatprep.subr.bf16.mxu0 0
        %557 = vmatpush1.bf16.msra.mxu0 0
        %558 = vmatprep.subr.bf16.mxu0 0
        %559 = vmatpush1.bf16.msra.mxu0 0
        %560 = vmatprep.subr.bf16.mxu0 0
        %561 = vmatpush1.bf16.msra.mxu0 0
        %562 = vmatprep.subr.bf16.mxu0 0
        %563 = vmatpush1.bf16.msra.mxu0 0
        %564 = vmatprep.subr.bf16.mxu0 0
        %565 = vmatpush1.bf16.msra.mxu0 0
        %566 = vmatprep.subr.bf16.mxu0 0
        %567 = vmatpush1.bf16.msra.mxu0 0
        %568 = vmatprep.subr.bf16.mxu0 0
        %569 = vmatpush1.bf16.msra.mxu0 0
        %570 = vmatprep.subr.bf16.mxu0 0
        %571 = vmatpush1.bf16.msra.mxu0 0
        %572 = vmatprep.subr.bf16.mxu0 0
        %573 = vmatpush1.bf16.msra.mxu0 0
        %574 = vmatprep.subr.bf16.mxu0 0
        %575 = vmatpush1.bf16.msra.mxu0 0
        %576 = vmatprep.subr.bf16.mxu0 0
        %577 = vmatpush1.bf16.msra.mxu0 0
        %578 = vmatprep.subr.bf16.mxu0 0
        %579 = vmatpush1.bf16.msra.mxu0 0
        %580 = vmatprep.subr.bf16.mxu0 0
        %581 = vmatpush1.bf16.msra.mxu0 0
        %582 = vmatprep.subr.bf16.mxu0 0
        %583 = vmatpush1.bf16.msra.mxu0 0
        %584 = vmatprep.mubr.bf16.mxu0 0
        %585 = vmatmul.mubr.bf16.gmra.mrb[0].mxu0 %v546
        %v586 = vpop.f32.mrb[0].mxu0
        %v587 = vadd.f32 %v478, %v586
        %v588 = vpop.f32.mrb[0].mxu0
        %v589 = vpop.f32.mrb[0].mxu0
        %v590 = vadd.f32 %v481, %v589
        %v591 = vpop.f32.mrb[0].mxu0
        %592 = vdwg.mxu0
        %v593 = vmul.f32 %v587, 0.25
        %v594 = vmul.f32 %v590, 0.25
        %v595 = vld [vmem:[%s5] sm:$0x3]
        %v597 = vsel %vm548, %v595, 0
        %599 = vmatprep.subr.bf16.mxu0 0
        %600 = vmatpush1.bf16.msra.mxu0 %v597
        %601 = vmatprep.subr.bf16.mxu0 0
        %602 = vmatpush1.bf16.msra.mxu0 0
        %603 = vmatprep.subr.bf16.mxu0 0
        %604 = vmatpush1.bf16.msra.mxu0 0
        %605 = vmatprep.subr.bf16.mxu0 0
        %606 = vmatpush1.bf16.msra.mxu0 0
        %607 = vmatprep.subr.bf16.mxu0 0
        %608 = vmatpush1.bf16.msra.mxu0 0
        %609 = vmatprep.subr.bf16.mxu0 0
        %610 = vmatpush1.bf16.msra.mxu0 0
        %611 = vmatprep.subr.bf16.mxu0 0
        %612 = vmatpush1.bf16.msra.mxu0 0
        %613 = vmatprep.subr.bf16.mxu0 0
        %614 = vmatpush1.bf16.msra.mxu0 0
        %615 = vmatprep.subr.bf16.mxu0 0
        %616 = vmatpush1.bf16.msra.mxu0 0
        %617 = vmatprep.subr.bf16.mxu0 0
        %618 = vmatpush1.bf16.msra.mxu0 0
        %619 = vmatprep.subr.bf16.mxu0 0
        %620 = vmatpush1.bf16.msra.mxu0 0
        %621 = vmatprep.subr.bf16.mxu0 0
        %622 = vmatpush1.bf16.msra.mxu0 0
        %623 = vmatprep.subr.bf16.mxu0 0
        %624 = vmatpush1.bf16.msra.mxu0 0
        %625 = vmatprep.subr.bf16.mxu0 0
        %626 = vmatpush1.bf16.msra.mxu0 0
        %627 = vmatprep.subr.bf16.mxu0 0
        %628 = vmatpush1.bf16.msra.mxu0 0
        %629 = vmatprep.subr.bf16.mxu0 0
        %630 = vmatpush1.bf16.msra.mxu0 0
        %631 = vmatprep.mubr.bf16.mxu0 0
        %632 = vmatmul.mubr.bf16.gmra.mrb[0].mxu0 %v546
        %v633 = vpop.f32.mrb[0].mxu0
        %v634 = vadd.f32 %v530, %v633
        %v635 = vpop.f32.mrb[0].mxu0
        %v636 = vpop.f32.mrb[0].mxu0
        %v637 = vadd.f32 %v533, %v636
        %v638 = vpop.f32.mrb[0].mxu0
        %639 = vdwg.mxu0
        %v640 = vpack.c.bf16 %v637, %v634
        %v641 = vpack.c.bf16 %v594, %v593
        %vm642 = vcmask 130048
        %v644 = vsel %vm642, %v640, 0
        %v647 = vsel %vm642, %v641, 0
        %649 = vmatprep.subr.bf16.mxu0 0
        %650 = vmatpush1.bf16.xpose.msra.mxu0 %v647
        %651 = vmatprep.subr.bf16.mxu0 0
        %652 = vmatpush1.bf16.xpose.msra.mxu0 0
        %653 = vmatprep.subr.bf16.mxu0 0
        %654 = vmatpush1.bf16.xpose.msra.mxu0 0
        %655 = vmatprep.subr.bf16.mxu0 0
        %656 = vmatpush1.bf16.xpose.msra.mxu0 0
        %657 = vmatprep.subr.bf16.mxu0 0
        %658 = vmatpush1.bf16.xpose.msra.mxu0 0
        %659 = vmatprep.subr.bf16.mxu0 0
        %660 = vmatpush1.bf16.xpose.msra.mxu0 0
        %661 = vmatprep.subr.bf16.mxu0 0
        %662 = vmatpush1.bf16.xpose.msra.mxu0 0
        %663 = vmatprep.subr.bf16.mxu0 0
        %664 = vmatpush1.bf16.xpose.msra.mxu0 0
        %665 = vmatprep.subr.bf16.mxu0 0
        %666 = vmatpush1.bf16.xpose.msra.mxu0 0
        %667 = vmatprep.subr.bf16.mxu0 0
        %668 = vmatpush1.bf16.xpose.msra.mxu0 0
        %669 = vmatprep.subr.bf16.mxu0 0
        %670 = vmatpush1.bf16.xpose.msra.mxu0 0
        %671 = vmatprep.subr.bf16.mxu0 0
        %672 = vmatpush1.bf16.xpose.msra.mxu0 0
        %673 = vmatprep.subr.bf16.mxu0 0
        %674 = vmatpush1.bf16.xpose.msra.mxu0 0
        %675 = vmatprep.subr.bf16.mxu0 0
        %676 = vmatpush1.bf16.xpose.msra.mxu0 0
        %677 = vmatprep.subr.bf16.mxu0 0
        %678 = vmatpush1.bf16.xpose.msra.mxu0 0
        %679 = vmatprep.subr.bf16.mxu0 0
        %680 = vmatpush1.bf16.xpose.msra.mxu0 0
        %681 = vmatprep.mubr.bf16.mxu0 0
        %682 = vmatmul.mubr.bf16.gmra.mrb[0].mxu0 %v644
        %v683 = vpop.f32.mrb[0].mxu0
        %v684 = vadd.f32 0.0, %v683
        %v685 = vpop.f32.mrb[0].mxu0
        %v686 = vpop.f32.mrb[0].mxu0
        %v687 = vadd.f32 0.0, %v686
        %v688 = vpop.f32.mrb[0].mxu0
        %689 = vdwg.mxu0
        %v690 = vsel %vm642, %v684, -inf
        %v691 = vsel %vm642, %v687, -inf
        %v692 = vmax.f32 %v690, %v691
        %v693 = vrot.slane %v692, 4
        %v694 = vmax.f32 %v692, %v693
        %v695 = vrot.slane %v694, 2
        %v696 = vmax.f32 %v694, %v695
        %v697 = vrot.slane %v696, 1
        %v698 = vmax.f32 %v696, %v697
        %v699 = vsub.f32 %v684, %v698
        %v700 = vsub.f32 %v687, %v698
        %v701 = vmul.f32 %v699, 1.442695
        %v702 = vpow.pop %v701
        %v703 = vmul.f32 %v700, 1.442695
        %v704 = vpow.pop %v703
        %v705 = vsel %vm642, %v702, 0.0
        %v706 = vsel %vm642, %v704, 0.0
        %v707 = vadd.f32 %v705, %v706
        %v708 = vrot.slane %v707, 4
        %v709 = vadd.f32 %v707, %v708
        %v710 = vrot.slane %v709, 2
        %v711 = vadd.f32 %v709, %v710
        %v712 = vrot.slane %v711, 1
        %v713 = vadd.f32 %v711, %v712
        %v714 = vrcp.pop %v713
        %v715 = vmul.f32 %v702, %v714
        %v716 = vmul.f32 %v704, %v714
        %v717 = vpack.c.bf16 %v716, %v715
        %v720 = vsel %vm642, %v717, 0
        %722 = vmatprep.subr.bf16.mxu0 0
        %723 = vmatpush1.bf16.msra.mxu0 %v543
        %724 = vmatprep.subr.bf16.mxu0 0
        %725 = vmatpush1.bf16.msra.mxu0 0
        %726 = vmatprep.subr.bf16.mxu0 0
        %727 = vmatpush1.bf16.msra.mxu0 0
        %728 = vmatprep.subr.bf16.mxu0 0
        %729 = vmatpush1.bf16.msra.mxu0 0
        %730 = vmatprep.subr.bf16.mxu0 0
        %731 = vmatpush1.bf16.msra.mxu0 0
        %732 = vmatprep.subr.bf16.mxu0 0
        %733 = vmatpush1.bf16.msra.mxu0 0
        %734 = vmatprep.subr.bf16.mxu0 0
        %735 = vmatpush1.bf16.msra.mxu0 0
        %736 = vmatprep.subr.bf16.mxu0 0
        %737 = vmatpush1.bf16.msra.mxu0 0
        %738 = vmatprep.subr.bf16.mxu0 0
        %739 = vmatpush1.bf16.msra.mxu0 0
        %740 = vmatprep.subr.bf16.mxu0 0
        %741 = vmatpush1.bf16.msra.mxu0 0
        %742 = vmatprep.subr.bf16.mxu0 0
        %743 = vmatpush1.bf16.msra.mxu0 0
        %744 = vmatprep.subr.bf16.mxu0 0
        %745 = vmatpush1.bf16.msra.mxu0 0
        %746 = vmatprep.subr.bf16.mxu0 0
        %747 = vmatpush1.bf16.msra.mxu0 0
        %748 = vmatprep.subr.bf16.mxu0 0
        %749 = vmatpush1.bf16.msra.mxu0 0
        %750 = vmatprep.subr.bf16.mxu0 0
        %751 = vmatpush1.bf16.msra.mxu0 0
        %752 = vmatprep.subr.bf16.mxu0 0
        %753 = vmatpush1.bf16.msra.mxu0 0
        %754 = vmatprep.mubr.bf16.mxu0 0
        %755 = vmatmul.mubr.bf16.gmra.mrb[0].mxu0 %v720
        %v756 = vpop.f32.mrb[0].mxu0
        %v757 = vadd.f32 0.0, %v756
        %v758 = vpop.f32.mrb[0].mxu0
        %v759 = vpop.f32.mrb[0].mxu0
        %v760 = vadd.f32 0.0, %v759
        %v761 = vpop.f32.mrb[0].mxu0
        %762 = vdwg.mxu0
        %v763 = vld [vmem:[%s8] sm:$0xf]
        %v764 = vld [vmem:[%s9] sm:$0xf]
        %v765 = vpack.c.bf16 %v760, %v757
        %v767 = vsel %vm544, %v764, 0
        %v770 = vsel %vm544, %v765, 0
        %772 = vmatprep.subr.bf16.mxu0 0
        %773 = vmatpush1.bf16.xpose.msra.mxu0 %v770
        %774 = vmatprep.subr.bf16.mxu0 0
        %775 = vmatpush1.bf16.xpose.msra.mxu0 0
        %776 = vmatprep.subr.bf16.mxu0 0
        %777 = vmatpush1.bf16.xpose.msra.mxu0 0
        %778 = vmatprep.subr.bf16.mxu0 0
        %779 = vmatpush1.bf16.xpose.msra.mxu0 0
        %780 = vmatprep.subr.bf16.mxu0 0
        %781 = vmatpush1.bf16.xpose.msra.mxu0 0
        %782 = vmatprep.subr.bf16.mxu0 0
        %783 = vmatpush1.bf16.xpose.msra.mxu0 0
        %784 = vmatprep.subr.bf16.mxu0 0
        %785 = vmatpush1.bf16.xpose.msra.mxu0 0
        %786 = vmatprep.subr.bf16.mxu0 0
        %787 = vmatpush1.bf16.xpose.msra.mxu0 0
        %788 = vmatprep.subr.bf16.mxu0 0
        %789 = vmatpush1.bf16.xpose.msra.mxu0 0
        %790 = vmatprep.subr.bf16.mxu0 0
        %791 = vmatpush1.bf16.xpose.msra.mxu0 0
        %792 = vmatprep.subr.bf16.mxu0 0
        %793 = vmatpush1.bf16.xpose.msra.mxu0 0
        %794 = vmatprep.subr.bf16.mxu0 0
        %795 = vmatpush1.bf16.xpose.msra.mxu0 0
        %796 = vmatprep.subr.bf16.mxu0 0
        %797 = vmatpush1.bf16.xpose.msra.mxu0 0
        %798 = vmatprep.subr.bf16.mxu0 0
        %799 = vmatpush1.bf16.xpose.msra.mxu0 0
        %800 = vmatprep.subr.bf16.mxu0 0
        %801 = vmatpush1.bf16.xpose.msra.mxu0 0
        %802 = vmatprep.subr.bf16.mxu0 0
        %803 = vmatpush1.bf16.xpose.msra.mxu0 0
        %804 = vmatprep.mubr.bf16.mxu0 0
        %805 = vmatmul.mubr.bf16.gmra.mrb[0].mxu0 %v767
        %v806 = vpop.f32.mrb[0].mxu0
        %v807 = vadd.f32 0.0, %v806
        %v808 = vpop.f32.mrb[0].mxu0
        %v809 = vpop.f32.mrb[0].mxu0
        %v810 = vpop.f32.mrb[0].mxu0
        %811 = vdwg.mxu0
        %v813 = vsel %vm544, %v763, 0
        %815 = vmatprep.subr.bf16.mxu0 0
        %816 = vmatpush1.bf16.xpose.msra.mxu0 %v546
        %817 = vmatprep.subr.bf16.mxu0 0
        %818 = vmatpush1.bf16.xpose.msra.mxu0 0
        %819 = vmatprep.subr.bf16.mxu0 0
        %820 = vmatpush1.bf16.xpose.msra.mxu0 0
        %821 = vmatprep.subr.bf16.mxu0 0
        %822 = vmatpush1.bf16.xpose.msra.mxu0 0
        %823 = vmatprep.subr.bf16.mxu0 0
        %824 = vmatpush1.bf16.xpose.msra.mxu0 0
        %825 = vmatprep.subr.bf16.mxu0 0
        %826 = vmatpush1.bf16.xpose.msra.mxu0 0
        %827 = vmatprep.subr.bf16.mxu0 0
        %828 = vmatpush1.bf16.xpose.msra.mxu0 0
        %829 = vmatprep.subr.bf16.mxu0 0
        %830 = vmatpush1.bf16.xpose.msra.mxu0 0
        %831 = vmatprep.subr.bf16.mxu0 0
        %832 = vmatpush1.bf16.xpose.msra.mxu0 0
        %833 = vmatprep.subr.bf16.mxu0 0
        %834 = vmatpush1.bf16.xpose.msra.mxu0 0
        %835 = vmatprep.subr.bf16.mxu0 0
        %836 = vmatpush1.bf16.xpose.msra.mxu0 0
        %837 = vmatprep.subr.bf16.mxu0 0
        %838 = vmatpush1.bf16.xpose.msra.mxu0 0
        %839 = vmatprep.subr.bf16.mxu0 0
        %840 = vmatpush1.bf16.xpose.msra.mxu0 0
        %841 = vmatprep.subr.bf16.mxu0 0
        %842 = vmatpush1.bf16.xpose.msra.mxu0 0
        %843 = vmatprep.subr.bf16.mxu0 0
        %844 = vmatpush1.bf16.xpose.msra.mxu0 0
        %845 = vmatprep.subr.bf16.mxu0 0
        %846 = vmatpush1.bf16.xpose.msra.mxu0 0
        %847 = vmatprep.mubr.bf16.mxu0 0
        %848 = vmatmul.mubr.bf16.gmra.mrb[0].mxu0 %v813
        %v849 = vpop.f32.mrb[0].mxu0
        %v850 = vadd.f32 %v807, %v849
        %v851 = vpop.f32.mrb[0].mxu0
        %v852 = vpop.f32.mrb[0].mxu0
        %v853 = vpop.f32.mrb[0].mxu0
        %854 = vdwg.mxu0
        %v855 = vld [vmem:[%s10] sm:$0xff]
        %857 = vset.pattern.permute.xlu0 0
        %858 = vperm.xlu0 %857, %v855
        %v859 = vpop.permute.xlu0 %858
        %v861 = vadd.f32 %v850, %v859
        %862 = vst.msk [vmem:[%s406] sm:$0xff] %vm642, %v861
        %s863 = scalar_lea.vmem %s416, 8
        %v864 = vld [vmem:[%s863] sm:$0xf]
        %v865 = vld [vmem:[%s863 + $0x4] sm:$0xf]
        %v866 = vld [vmem:[%s2] sm:$0x3]
        %v869 = vunpack.c.l.b16 %v864
        %v870 = vunpack.c.l.b16 %v865
        %v871 = vpack.c.b16 %v870, %v869
        %v873 = vsel %vm544, %v871, 0
        %v876 = vsel %vm548, %v866, 0
        %878 = vmatprep.subr.bf16.mxu0 0
        %879 = vmatpush1.bf16.msra.mxu0 %v876
        %880 = vmatprep.subr.bf16.mxu0 0
        %881 = vmatpush1.bf16.msra.mxu0 0
        %882 = vmatprep.subr.bf16.mxu0 0
        %883 = vmatpush1.bf16.msra.mxu0 0
        %884 = vmatprep.subr.bf16.mxu0 0
        %885 = vmatpush1.bf16.msra.mxu0 0
        %886 = vmatprep.subr.bf16.mxu0 0
        %887 = vmatpush1.bf16.msra.mxu0 0
        %888 = vmatprep.subr.bf16.mxu0 0
        %889 = vmatpush1.bf16.msra.mxu0 0
        %890 = vmatprep.subr.bf16.mxu0 0
        %891 = vmatpush1.bf16.msra.mxu0 0
        %892 = vmatprep.subr.bf16.mxu0 0
        %893 = vmatpush1.bf16.msra.mxu0 0
        %894 = vmatprep.subr.bf16.mxu0 0
        %895 = vmatpush1.bf16.msra.mxu0 0
        %896 = vmatprep.subr.bf16.mxu0 0
        %897 = vmatpush1.bf16.msra.mxu0 0
        %898 = vmatprep.subr.bf16.mxu0 0
        %899 = vmatpush1.bf16.msra.mxu0 0
        %900 = vmatprep.subr.bf16.mxu0 0
        %901 = vmatpush1.bf16.msra.mxu0 0
        %902 = vmatprep.subr.bf16.mxu0 0
        %903 = vmatpush1.bf16.msra.mxu0 0
        %904 = vmatprep.subr.bf16.mxu0 0
        %905 = vmatpush1.bf16.msra.mxu0 0
        %906 = vmatprep.subr.bf16.mxu0 0
        %907 = vmatpush1.bf16.msra.mxu0 0
        %908 = vmatprep.subr.bf16.mxu0 0
        %909 = vmatpush1.bf16.msra.mxu0 0
        %910 = vmatprep.mubr.bf16.mxu0 0
        %911 = vmatmul.mubr.bf16.gmra.mrb[0].mxu0 %v873
        %v912 = vpop.f32.mrb[0].mxu0
        %v913 = vadd.f32 %v478, %v912
        %v914 = vpop.f32.mrb[0].mxu0
        %v915 = vpop.f32.mrb[0].mxu0
        %v916 = vadd.f32 %v481, %v915
        %v917 = vpop.f32.mrb[0].mxu0
        %918 = vdwg.mxu0
        %v919 = vmul.f32 %v913, 0.25
        %v920 = vmul.f32 %v916, 0.25
        %v921 = vld [vmem:[%s5] sm:$0x3]
        %v923 = vsel %vm548, %v921, 0
        %925 = vmatprep.subr.bf16.mxu0 0
        %926 = vmatpush1.bf16.msra.mxu0 %v923
        %927 = vmatprep.subr.bf16.mxu0 0
        %928 = vmatpush1.bf16.msra.mxu0 0
        %929 = vmatprep.subr.bf16.mxu0 0
        %930 = vmatpush1.bf16.msra.mxu0 0
        %931 = vmatprep.subr.bf16.mxu0 0
        %932 = vmatpush1.bf16.msra.mxu0 0
        %933 = vmatprep.subr.bf16.mxu0 0
        %934 = vmatpush1.bf16.msra.mxu0 0
        %935 = vmatprep.subr.bf16.mxu0 0
        %936 = vmatpush1.bf16.msra.mxu0 0
        %937 = vmatprep.subr.bf16.mxu0 0
        %938 = vmatpush1.bf16.msra.mxu0 0
        %939 = vmatprep.subr.bf16.mxu0 0
        %940 = vmatpush1.bf16.msra.mxu0 0
        %941 = vmatprep.subr.bf16.mxu0 0
        %942 = vmatpush1.bf16.msra.mxu0 0
        %943 = vmatprep.subr.bf16.mxu0 0
        %944 = vmatpush1.bf16.msra.mxu0 0
        %945 = vmatprep.subr.bf16.mxu0 0
        %946 = vmatpush1.bf16.msra.mxu0 0
        %947 = vmatprep.subr.bf16.mxu0 0
        %948 = vmatpush1.bf16.msra.mxu0 0
        %949 = vmatprep.subr.bf16.mxu0 0
        %950 = vmatpush1.bf16.msra.mxu0 0
        %951 = vmatprep.subr.bf16.mxu0 0
        %952 = vmatpush1.bf16.msra.mxu0 0
        %953 = vmatprep.subr.bf16.mxu0 0
        %954 = vmatpush1.bf16.msra.mxu0 0
        %955 = vmatprep.subr.bf16.mxu0 0
        %956 = vmatpush1.bf16.msra.mxu0 0
        %957 = vmatprep.mubr.bf16.mxu0 0
        %958 = vmatmul.mubr.bf16.gmra.mrb[0].mxu0 %v873
        %v959 = vpop.f32.mrb[0].mxu0
        %v960 = vadd.f32 %v530, %v959
        %v961 = vpop.f32.mrb[0].mxu0
        %v962 = vpop.f32.mrb[0].mxu0
        %v963 = vadd.f32 %v533, %v962
        %v964 = vpop.f32.mrb[0].mxu0
        %965 = vdwg.mxu0
        %v966 = vpack.c.bf16 %v963, %v960
        %v967 = vpack.c.bf16 %v920, %v919
        %v969 = vsel %vm642, %v966, 0
        %v972 = vsel %vm642, %v967, 0
        %974 = vmatprep.subr.bf16.mxu0 0
        %975 = vmatpush1.bf16.xpose.msra.mxu0 %v972
        %976 = vmatprep.subr.bf16.mxu0 0
        %977 = vmatpush1.bf16.xpose.msra.mxu0 0
        %978 = vmatprep.subr.bf16.mxu0 0
        %979 = vmatpush1.bf16.xpose.msra.mxu0 0
        %980 = vmatprep.subr.bf16.mxu0 0
        %981 = vmatpush1.bf16.xpose.msra.mxu0 0
        %982 = vmatprep.subr.bf16.mxu0 0
        %983 = vmatpush1.bf16.xpose.msra.mxu0 0
        %984 = vmatprep.subr.bf16.mxu0 0
        %985 = vmatpush1.bf16.xpose.msra.mxu0 0
        %986 = vmatprep.subr.bf16.mxu0 0
        %987 = vmatpush1.bf16.xpose.msra.mxu0 0
        %988 = vmatprep.subr.bf16.mxu0 0
        %989 = vmatpush1.bf16.xpose.msra.mxu0 0
        %990 = vmatprep.subr.bf16.mxu0 0
        %991 = vmatpush1.bf16.xpose.msra.mxu0 0
        %992 = vmatprep.subr.bf16.mxu0 0
        %993 = vmatpush1.bf16.xpose.msra.mxu0 0
        %994 = vmatprep.subr.bf16.mxu0 0
        %995 = vmatpush1.bf16.xpose.msra.mxu0 0
        %996 = vmatprep.subr.bf16.mxu0 0
        %997 = vmatpush1.bf16.xpose.msra.mxu0 0
        %998 = vmatprep.subr.bf16.mxu0 0
        %999 = vmatpush1.bf16.xpose.msra.mxu0 0
        %1000 = vmatprep.subr.bf16.mxu0 0
        %1001 = vmatpush1.bf16.xpose.msra.mxu0 0
        %1002 = vmatprep.subr.bf16.mxu0 0
        %1003 = vmatpush1.bf16.xpose.msra.mxu0 0
        %1004 = vmatprep.subr.bf16.mxu0 0
        %1005 = vmatpush1.bf16.xpose.msra.mxu0 0
        %1006 = vmatprep.mubr.bf16.mxu0 0
        %1007 = vmatmul.mubr.bf16.gmra.mrb[0].mxu0 %v969
        %v1008 = vpop.f32.mrb[0].mxu0
        %v1009 = vadd.f32 0.0, %v1008
        %v1010 = vpop.f32.mrb[0].mxu0
        %v1011 = vpop.f32.mrb[0].mxu0
        %v1012 = vadd.f32 0.0, %v1011
        %v1013 = vpop.f32.mrb[0].mxu0
        %1014 = vdwg.mxu0
        %v1015 = vsel %vm642, %v1009, -inf
        %v1016 = vsel %vm642, %v1012, -inf
        %v1017 = vmax.f32 %v1015, %v1016
        %v1018 = vrot.slane %v1017, 4
        %v1019 = vmax.f32 %v1017, %v1018
        %v1020 = vrot.slane %v1019, 2
        %v1021 = vmax.f32 %v1019, %v1020
        %v1022 = vrot.slane %v1021, 1
        %v1023 = vmax.f32 %v1021, %v1022
        %v1024 = vsub.f32 %v1009, %v1023
        %v1025 = vsub.f32 %v1012, %v1023
        %v1026 = vmul.f32 %v1024, 1.442695
        %v1027 = vpow.pop %v1026
        %v1028 = vmul.f32 %v1025, 1.442695
        %v1029 = vpow.pop %v1028
        %v1030 = vsel %vm642, %v1027, 0.0
        %v1031 = vsel %vm642, %v1029, 0.0
        %v1032 = vadd.f32 %v1030, %v1031
        %v1033 = vrot.slane %v1032, 4
        %v1034 = vadd.f32 %v1032, %v1033
        %v1035 = vrot.slane %v1034, 2
        %v1036 = vadd.f32 %v1034, %v1035
        %v1037 = vrot.slane %v1036, 1
        %v1038 = vadd.f32 %v1036, %v1037
        %v1039 = vrcp.pop %v1038
        %v1040 = vmul.f32 %v1027, %v1039
        %v1041 = vmul.f32 %v1029, %v1039
        %v1042 = vpack.c.bf16 %v1041, %v1040
        %v1045 = vsel %vm642, %v1042, 0
        %1047 = vmatprep.subr.bf16.mxu0 0
        %1048 = vmatpush1.bf16.msra.mxu0 %v871
        %1049 = vmatprep.subr.bf16.mxu0 0
        %1050 = vmatpush1.bf16.msra.mxu0 0
        %1051 = vmatprep.subr.bf16.mxu0 0
        %1052 = vmatpush1.bf16.msra.mxu0 0
        %1053 = vmatprep.subr.bf16.mxu0 0
        %1054 = vmatpush1.bf16.msra.mxu0 0
        %1055 = vmatprep.subr.bf16.mxu0 0
        %1056 = vmatpush1.bf16.msra.mxu0 0
        %1057 = vmatprep.subr.bf16.mxu0 0
        %1058 = vmatpush1.bf16.msra.mxu0 0
        %1059 = vmatprep.subr.bf16.mxu0 0
        %1060 = vmatpush1.bf16.msra.mxu0 0
        %1061 = vmatprep.subr.bf16.mxu0 0
        %1062 = vmatpush1.bf16.msra.mxu0 0
        %1063 = vmatprep.subr.bf16.mxu0 0
        %1064 = vmatpush1.bf16.msra.mxu0 0
        %1065 = vmatprep.subr.bf16.mxu0 0
        %1066 = vmatpush1.bf16.msra.mxu0 0
        %1067 = vmatprep.subr.bf16.mxu0 0
        %1068 = vmatpush1.bf16.msra.mxu0 0
        %1069 = vmatprep.subr.bf16.mxu0 0
        %1070 = vmatpush1.bf16.msra.mxu0 0
        %1071 = vmatprep.subr.bf16.mxu0 0
        %1072 = vmatpush1.bf16.msra.mxu0 0
        %1073 = vmatprep.subr.bf16.mxu0 0
        %1074 = vmatpush1.bf16.msra.mxu0 0
        %1075 = vmatprep.subr.bf16.mxu0 0
        %1076 = vmatpush1.bf16.msra.mxu0 0
        %1077 = vmatprep.subr.bf16.mxu0 0
        %1078 = vmatpush1.bf16.msra.mxu0 0
        %1079 = vmatprep.mubr.bf16.mxu0 0
        %1080 = vmatmul.mubr.bf16.gmra.mrb[0].mxu0 %v1045
        %v1081 = vpop.f32.mrb[0].mxu0
        %v1082 = vadd.f32 0.0, %v1081
        %v1083 = vpop.f32.mrb[0].mxu0
        %v1084 = vpop.f32.mrb[0].mxu0
        %v1085 = vadd.f32 0.0, %v1084
        %v1086 = vpop.f32.mrb[0].mxu0
        %1087 = vdwg.mxu0
        %v1088 = vld [vmem:[%s8] sm:$0xf]
        %v1089 = vld [vmem:[%s9] sm:$0xf]
        %v1090 = vpack.c.bf16 %v1085, %v1082
        %v1092 = vsel %vm544, %v1089, 0
        %v1095 = vsel %vm544, %v1090, 0
        %1097 = vmatprep.subr.bf16.mxu0 0
        %1098 = vmatpush1.bf16.xpose.msra.mxu0 %v1095
        %1099 = vmatprep.subr.bf16.mxu0 0
        %1100 = vmatpush1.bf16.xpose.msra.mxu0 0
        %1101 = vmatprep.subr.bf16.mxu0 0
        %1102 = vmatpush1.bf16.xpose.msra.mxu0 0
        %1103 = vmatprep.subr.bf16.mxu0 0
        %1104 = vmatpush1.bf16.xpose.msra.mxu0 0
        %1105 = vmatprep.subr.bf16.mxu0 0
        %1106 = vmatpush1.bf16.xpose.msra.mxu0 0
        %1107 = vmatprep.subr.bf16.mxu0 0
        %1108 = vmatpush1.bf16.xpose.msra.mxu0 0
        %1109 = vmatprep.subr.bf16.mxu0 0
        %1110 = vmatpush1.bf16.xpose.msra.mxu0 0
        %1111 = vmatprep.subr.bf16.mxu0 0
        %1112 = vmatpush1.bf16.xpose.msra.mxu0 0
        %1113 = vmatprep.subr.bf16.mxu0 0
        %1114 = vmatpush1.bf16.xpose.msra.mxu0 0
        %1115 = vmatprep.subr.bf16.mxu0 0
        %1116 = vmatpush1.bf16.xpose.msra.mxu0 0
        %1117 = vmatprep.subr.bf16.mxu0 0
        %1118 = vmatpush1.bf16.xpose.msra.mxu0 0
        %1119 = vmatprep.subr.bf16.mxu0 0
        %1120 = vmatpush1.bf16.xpose.msra.mxu0 0
        %1121 = vmatprep.subr.bf16.mxu0 0
        %1122 = vmatpush1.bf16.xpose.msra.mxu0 0
        %1123 = vmatprep.subr.bf16.mxu0 0
        %1124 = vmatpush1.bf16.xpose.msra.mxu0 0
        %1125 = vmatprep.subr.bf16.mxu0 0
        %1126 = vmatpush1.bf16.xpose.msra.mxu0 0
        %1127 = vmatprep.subr.bf16.mxu0 0
        %1128 = vmatpush1.bf16.xpose.msra.mxu0 0
        %1129 = vmatprep.mubr.bf16.mxu0 0
        %1130 = vmatmul.mubr.bf16.gmra.mrb[0].mxu0 %v1092
        %v1131 = vpop.f32.mrb[0].mxu0
        %v1132 = vadd.f32 0.0, %v1131
        %v1133 = vpop.f32.mrb[0].mxu0
        %v1134 = vpop.f32.mrb[0].mxu0
        %v1135 = vpop.f32.mrb[0].mxu0
        %1136 = vdwg.mxu0
        %v1138 = vsel %vm544, %v1088, 0
        %1140 = vmatprep.subr.bf16.mxu0 0
        %1141 = vmatpush1.bf16.xpose.msra.mxu0 %v873
        %1142 = vmatprep.subr.bf16.mxu0 0
        %1143 = vmatpush1.bf16.xpose.msra.mxu0 0
        %1144 = vmatprep.subr.bf16.mxu0 0
        %1145 = vmatpush1.bf16.xpose.msra.mxu0 0
        %1146 = vmatprep.subr.bf16.mxu0 0
        %1147 = vmatpush1.bf16.xpose.msra.mxu0 0
        %1148 = vmatprep.subr.bf16.mxu0 0
        %1149 = vmatpush1.bf16.xpose.msra.mxu0 0
        %1150 = vmatprep.subr.bf16.mxu0 0
        %1151 = vmatpush1.bf16.xpose.msra.mxu0 0
        %1152 = vmatprep.subr.bf16.mxu0 0
        %1153 = vmatpush1.bf16.xpose.msra.mxu0 0
        %1154 = vmatprep.subr.bf16.mxu0 0
        %1155 = vmatpush1.bf16.xpose.msra.mxu0 0
        %1156 = vmatprep.subr.bf16.mxu0 0
        %1157 = vmatpush1.bf16.xpose.msra.mxu0 0
        %1158 = vmatprep.subr.bf16.mxu0 0
        %1159 = vmatpush1.bf16.xpose.msra.mxu0 0
        %1160 = vmatprep.subr.bf16.mxu0 0
        %1161 = vmatpush1.bf16.xpose.msra.mxu0 0
        %1162 = vmatprep.subr.bf16.mxu0 0
        %1163 = vmatpush1.bf16.xpose.msra.mxu0 0
        %1164 = vmatprep.subr.bf16.mxu0 0
        %1165 = vmatpush1.bf16.xpose.msra.mxu0 0
        %1166 = vmatprep.subr.bf16.mxu0 0
        %1167 = vmatpush1.bf16.xpose.msra.mxu0 0
        %1168 = vmatprep.subr.bf16.mxu0 0
        %1169 = vmatpush1.bf16.xpose.msra.mxu0 0
        %1170 = vmatprep.subr.bf16.mxu0 0
        %1171 = vmatpush1.bf16.xpose.msra.mxu0 0
        %1172 = vmatprep.mubr.bf16.mxu0 0
        %1173 = vmatmul.mubr.bf16.gmra.mrb[0].mxu0 %v1138
        %v1174 = vpop.f32.mrb[0].mxu0
        %v1175 = vadd.f32 %v1132, %v1174
        %v1176 = vpop.f32.mrb[0].mxu0
        %v1177 = vpop.f32.mrb[0].mxu0
        %v1178 = vpop.f32.mrb[0].mxu0
        %1179 = vdwg.mxu0
        %v1180 = vld [vmem:[%s10] sm:$0xff]
        %1182 = vset.pattern.permute.xlu0 0
        %1183 = vperm.xlu0 %1182, %v1180
        %v1184 = vpop.permute.xlu0 %1183
        %v1186 = vadd.f32 %v1175, %v1184
        %s1187 = scalar_lea.vmem %s406, 8 [#allocation2]
        %1188 = vst.msk [vmem:[%s1187] sm:$0xff] %vm642, %v1186
        %s1189 = scalar_lea.vmem %s416, 16
        %v1190 = vld [vmem:[%s1189] sm:$0xf]
        %v1191 = vld [vmem:[%s1189 + $0x4] sm:$0xf]
        %v1192 = vld [vmem:[%s2] sm:$0x3]
        %v1195 = vunpack.c.l.b16 %v1190
        %v1196 = vunpack.c.l.b16 %v1191
        %v1197 = vpack.c.b16 %v1196, %v1195
        %v1199 = vsel %vm544, %v1197, 0
        %v1202 = vsel %vm548, %v1192, 0
        %1204 = vmatprep.subr.bf16.mxu0 0
        %1205 = vmatpush1.bf16.msra.mxu0 %v1202
        %1206 = vmatprep.subr.bf16.mxu0 0
        %1207 = vmatpush1.bf16.msra.mxu0 0
        %1208 = vmatprep.subr.bf16.mxu0 0
        %1209 = vmatpush1.bf16.msra.mxu0 0
        %1210 = vmatprep.subr.bf16.mxu0 0
        %1211 = vmatpush1.bf16.msra.mxu0 0
        %1212 = vmatprep.subr.bf16.mxu0 0
        %1213 = vmatpush1.bf16.msra.mxu0 0
        %1214 = vmatprep.subr.bf16.mxu0 0
        %1215 = vmatpush1.bf16.msra.mxu0 0
        %1216 = vmatprep.subr.bf16.mxu0 0
        %1217 = vmatpush1.bf16.msra.mxu0 0
        %1218 = vmatprep.subr.bf16.mxu0 0
        %1219 = vmatpush1.bf16.msra.mxu0 0
        %1220 = vmatprep.subr.bf16.mxu0 0
        %1221 = vmatpush1.bf16.msra.mxu0 0
        %1222 = vmatprep.subr.bf16.mxu0 0
        %1223 = vmatpush1.bf16.msra.mxu0 0
        %1224 = vmatprep.subr.bf16.mxu0 0
        %1225 = vmatpush1.bf16.msra.mxu0 0
        %1226 = vmatprep.subr.bf16.mxu0 0
        %1227 = vmatpush1.bf16.msra.mxu0 0
        %1228 = vmatprep.subr.bf16.mxu0 0
        %1229 = vmatpush1.bf16.msra.mxu0 0
        %1230 = vmatprep.subr.bf16.mxu0 0
        %1231 = vmatpush1.bf16.msra.mxu0 0
        %1232 = vmatprep.subr.bf16.mxu0 0
        %1233 = vmatpush1.bf16.msra.mxu0 0
        %1234 = vmatprep.subr.bf16.mxu0 0
        %1235 = vmatpush1.bf16.msra.mxu0 0
        %1236 = vmatprep.mubr.bf16.mxu0 0
        %1237 = vmatmul.mubr.bf16.gmra.mrb[0].mxu0 %v1199
        %v1238 = vpop.f32.mrb[0].mxu0
        %v1239 = vadd.f32 %v478, %v1238
        %v1240 = vpop.f32.mrb[0].mxu0
        %v1241 = vpop.f32.mrb[0].mxu0
        %v1242 = vadd.f32 %v481, %v1241
        %v1243 = vpop.f32.mrb[0].mxu0
        %1244 = vdwg.mxu0
        %v1245 = vmul.f32 %v1239, 0.25
        %v1246 = vmul.f32 %v1242, 0.25
        %v1247 = vld [vmem:[%s5] sm:$0x3]
        %v1249 = vsel %vm548, %v1247, 0
        %1251 = vmatprep.subr.bf16.mxu0 0
        %1252 = vmatpush1.bf16.msra.mxu0 %v1249
        %1253 = vmatprep.subr.bf16.mxu0 0
        %1254 = vmatpush1.bf16.msra.mxu0 0
        %1255 = vmatprep.subr.bf16.mxu0 0
        %1256 = vmatpush1.bf16.msra.mxu0 0
        %1257 = vmatprep.subr.bf16.mxu0 0
        %1258 = vmatpush1.bf16.msra.mxu0 0
        %1259 = vmatprep.subr.bf16.mxu0 0
        %1260 = vmatpush1.bf16.msra.mxu0 0
        %1261 = vmatprep.subr.bf16.mxu0 0
        %1262 = vmatpush1.bf16.msra.mxu0 0
        %1263 = vmatprep.subr.bf16.mxu0 0
        %1264 = vmatpush1.bf16.msra.mxu0 0
        %1265 = vmatprep.subr.bf16.mxu0 0
        %1266 = vmatpush1.bf16.msra.mxu0 0
        %1267 = vmatprep.subr.bf16.mxu0 0
        %1268 = vmatpush1.bf16.msra.mxu0 0
        %1269 = vmatprep.subr.bf16.mxu0 0
        %1270 = vmatpush1.bf16.msra.mxu0 0
        %1271 = vmatprep.subr.bf16.mxu0 0
        %1272 = vmatpush1.bf16.msra.mxu0 0
        %1273 = vmatprep.subr.bf16.mxu0 0
        %1274 = vmatpush1.bf16.msra.mxu0 0
        %1275 = vmatprep.subr.bf16.mxu0 0
        %1276 = vmatpush1.bf16.msra.mxu0 0
        %1277 = vmatprep.subr.bf16.mxu0 0
        %1278 = vmatpush1.bf16.msra.mxu0 0
        %1279 = vmatprep.subr.bf16.mxu0 0
        %1280 = vmatpush1.bf16.msra.mxu0 0
        %1281 = vmatprep.subr.bf16.mxu0 0
        %1282 = vmatpush1.bf16.msra.mxu0 0
        %1283 = vmatprep.mubr.bf16.mxu0 0
        %1284 = vmatmul.mubr.bf16.gmra.mrb[0].mxu0 %v1199
        %v1285 = vpop.f32.mrb[0].mxu0
        %v1286 = vadd.f32 %v530, %v1285
        %v1287 = vpop.f32.mrb[0].mxu0
        %v1288 = vpop.f32.mrb[0].mxu0
        %v1289 = vadd.f32 %v533, %v1288
        %v1290 = vpop.f32.mrb[0].mxu0
        %1291 = vdwg.mxu0
        %v1292 = vpack.c.bf16 %v1289, %v1286
        %v1293 = vpack.c.bf16 %v1246, %v1245
        %v1295 = vsel %vm642, %v1292, 0
        %v1298 = vsel %vm642, %v1293, 0
        %1300 = vmatprep.subr.bf16.mxu0 0
        %1301 = vmatpush1.bf16.xpose.msra.mxu0 %v1298
        %1302 = vmatprep.subr.bf16.mxu0 0
        %1303 = vmatpush1.bf16.xpose.msra.mxu0 0
        %1304 = vmatprep.subr.bf16.mxu0 0
        %1305 = vmatpush1.bf16.xpose.msra.mxu0 0
        %1306 = vmatprep.subr.bf16.mxu0 0
        %1307 = vmatpush1.bf16.xpose.msra.mxu0 0
        %1308 = vmatprep.subr.bf16.mxu0 0
        %1309 = vmatpush1.bf16.xpose.msra.mxu0 0
        %1310 = vmatprep.subr.bf16.mxu0 0
        %1311 = vmatpush1.bf16.xpose.msra.mxu0 0
        %1312 = vmatprep.subr.bf16.mxu0 0
        %1313 = vmatpush1.bf16.xpose.msra.mxu0 0
        %1314 = vmatprep.subr.bf16.mxu0 0
        %1315 = vmatpush1.bf16.xpose.msra.mxu0 0
        %1316 = vmatprep.subr.bf16.mxu0 0
        %1317 = vmatpush1.bf16.xpose.msra.mxu0 0
        %1318 = vmatprep.subr.bf16.mxu0 0
        %1319 = vmatpush1.bf16.xpose.msra.mxu0 0
        %1320 = vmatprep.subr.bf16.mxu0 0
        %1321 = vmatpush1.bf16.xpose.msra.mxu0 0
        %1322 = vmatprep.subr.bf16.mxu0 0
        %1323 = vmatpush1.bf16.xpose.msra.mxu0 0
        %1324 = vmatprep.subr.bf16.mxu0 0
        %1325 = vmatpush1.bf16.xpose.msra.mxu0 0
        %1326 = vmatprep.subr.bf16.mxu0 0
        %1327 = vmatpush1.bf16.xpose.msra.mxu0 0
        %1328 = vmatprep.subr.bf16.mxu0 0
        %1329 = vmatpush1.bf16.xpose.msra.mxu0 0
        %1330 = vmatprep.subr.bf16.mxu0 0
        %1331 = vmatpush1.bf16.xpose.msra.mxu0 0
        %1332 = vmatprep.mubr.bf16.mxu0 0
        %1333 = vmatmul.mubr.bf16.gmra.mrb[0].mxu0 %v1295
        %v1334 = vpop.f32.mrb[0].mxu0
        %v1335 = vadd.f32 0.0, %v1334
        %v1336 = vpop.f32.mrb[0].mxu0
        %v1337 = vpop.f32.mrb[0].mxu0
        %v1338 = vadd.f32 0.0, %v1337
        %v1339 = vpop.f32.mrb[0].mxu0
        %1340 = vdwg.mxu0
        %v1341 = vsel %vm642, %v1335, -inf
        %v1342 = vsel %vm642, %v1338, -inf
        %v1343 = vmax.f32 %v1341, %v1342
        %v1344 = vrot.slane %v1343, 4
        %v1345 = vmax.f32 %v1343, %v1344
        %v1346 = vrot.slane %v1345, 2
        %v1347 = vmax.f32 %v1345, %v1346
        %v1348 = vrot.slane %v1347, 1
        %v1349 = vmax.f32 %v1347, %v1348
        %v1350 = vsub.f32 %v1335, %v1349
        %v1351 = vsub.f32 %v1338, %v1349
        %v1352 = vmul.f32 %v1350, 1.442695
        %v1353 = vpow.pop %v1352
        %v1354 = vmul.f32 %v1351, 1.442695
        %v1355 = vpow.pop %v1354
        %v1356 = vsel %vm642, %v1353, 0.0
        %v1357 = vsel %vm642, %v1355, 0.0
        %v1358 = vadd.f32 %v1356, %v1357
        %v1359 = vrot.slane %v1358, 4
        %v1360 = vadd.f32 %v1358, %v1359
        %v1361 = vrot.slane %v1360, 2
        %v1362 = vadd.f32 %v1360, %v1361
        %v1363 = vrot.slane %v1362, 1
        %v1364 = vadd.f32 %v1362, %v1363
        %v1365 = vrcp.pop %v1364
        %v1366 = vmul.f32 %v1353, %v1365
        %v1367 = vmul.f32 %v1355, %v1365
        %v1368 = vpack.c.bf16 %v1367, %v1366
        %v1371 = vsel %vm642, %v1368, 0
        %1373 = vmatprep.subr.bf16.mxu0 0
        %1374 = vmatpush1.bf16.msra.mxu0 %v1197
        %1375 = vmatprep.subr.bf16.mxu0 0
        %1376 = vmatpush1.bf16.msra.mxu0 0
        %1377 = vmatprep.subr.bf16.mxu0 0
        %1378 = vmatpush1.bf16.msra.mxu0 0
        %1379 = vmatprep.subr.bf16.mxu0 0
        %1380 = vmatpush1.bf16.msra.mxu0 0
        %1381 = vmatprep.subr.bf16.mxu0 0
        %1382 = vmatpush1.bf16.msra.mxu0 0
        %1383 = vmatprep.subr.bf16.mxu0 0
        %1384 = vmatpush1.bf16.msra.mxu0 0
        %1385 = vmatprep.subr.bf16.mxu0 0
        %1386 = vmatpush1.bf16.msra.mxu0 0
        %1387 = vmatprep.subr.bf16.mxu0 0
        %1388 = vmatpush1.bf16.msra.mxu0 0
        %1389 = vmatprep.subr.bf16.mxu0 0
        %1390 = vmatpush1.bf16.msra.mxu0 0
        %1391 = vmatprep.subr.bf16.mxu0 0
        %1392 = vmatpush1.bf16.msra.mxu0 0
        %1393 = vmatprep.subr.bf16.mxu0 0
        %1394 = vmatpush1.bf16.msra.mxu0 0
        %1395 = vmatprep.subr.bf16.mxu0 0
        %1396 = vmatpush1.bf16.msra.mxu0 0
        %1397 = vmatprep.subr.bf16.mxu0 0
        %1398 = vmatpush1.bf16.msra.mxu0 0
        %1399 = vmatprep.subr.bf16.mxu0 0
        %1400 = vmatpush1.bf16.msra.mxu0 0
        %1401 = vmatprep.subr.bf16.mxu0 0
        %1402 = vmatpush1.bf16.msra.mxu0 0
        %1403 = vmatprep.subr.bf16.mxu0 0
        %1404 = vmatpush1.bf16.msra.mxu0 0
        %1405 = vmatprep.mubr.bf16.mxu0 0
        %1406 = vmatmul.mubr.bf16.gmra.mrb[0].mxu0 %v1371
        %v1407 = vpop.f32.mrb[0].mxu0
        %v1408 = vadd.f32 0.0, %v1407
        %v1409 = vpop.f32.mrb[0].mxu0
        %v1410 = vpop.f32.mrb[0].mxu0
        %v1411 = vadd.f32 0.0, %v1410
        %v1412 = vpop.f32.mrb[0].mxu0
        %1413 = vdwg.mxu0
        %v1414 = vld [vmem:[%s8] sm:$0xf]
        %v1415 = vld [vmem:[%s9] sm:$0xf]
        %v1416 = vpack.c.bf16 %v1411, %v1408
        %v1418 = vsel %vm544, %v1415, 0
        %v1421 = vsel %vm544, %v1416, 0
        %1423 = vmatprep.subr.bf16.mxu0 0
        %1424 = vmatpush1.bf16.xpose.msra.mxu0 %v1421
        %1425 = vmatprep.subr.bf16.mxu0 0
        %1426 = vmatpush1.bf16.xpose.msra.mxu0 0
        %1427 = vmatprep.subr.bf16.mxu0 0
        %1428 = vmatpush1.bf16.xpose.msra.mxu0 0
        %1429 = vmatprep.subr.bf16.mxu0 0
        %1430 = vmatpush1.bf16.xpose.msra.mxu0 0
        %1431 = vmatprep.subr.bf16.mxu0 0
        %1432 = vmatpush1.bf16.xpose.msra.mxu0 0
        %1433 = vmatprep.subr.bf16.mxu0 0
        %1434 = vmatpush1.bf16.xpose.msra.mxu0 0
        %1435 = vmatprep.subr.bf16.mxu0 0
        %1436 = vmatpush1.bf16.xpose.msra.mxu0 0
        %1437 = vmatprep.subr.bf16.mxu0 0
        %1438 = vmatpush1.bf16.xpose.msra.mxu0 0
        %1439 = vmatprep.subr.bf16.mxu0 0
        %1440 = vmatpush1.bf16.xpose.msra.mxu0 0
        %1441 = vmatprep.subr.bf16.mxu0 0
        %1442 = vmatpush1.bf16.xpose.msra.mxu0 0
        %1443 = vmatprep.subr.bf16.mxu0 0
        %1444 = vmatpush1.bf16.xpose.msra.mxu0 0
        %1445 = vmatprep.subr.bf16.mxu0 0
        %1446 = vmatpush1.bf16.xpose.msra.mxu0 0
        %1447 = vmatprep.subr.bf16.mxu0 0
        %1448 = vmatpush1.bf16.xpose.msra.mxu0 0
        %1449 = vmatprep.subr.bf16.mxu0 0
        %1450 = vmatpush1.bf16.xpose.msra.mxu0 0
        %1451 = vmatprep.subr.bf16.mxu0 0
        %1452 = vmatpush1.bf16.xpose.msra.mxu0 0
        %1453 = vmatprep.subr.bf16.mxu0 0
        %1454 = vmatpush1.bf16.xpose.msra.mxu0 0
        %1455 = vmatprep.mubr.bf16.mxu0 0
        %1456 = vmatmul.mubr.bf16.gmra.mrb[0].mxu0 %v1418
        %v1457 = vpop.f32.mrb[0].mxu0
        %v1458 = vadd.f32 0.0, %v1457
        %v1459 = vpop.f32.mrb[0].mxu0
        %v1460 = vpop.f32.mrb[0].mxu0
        %v1461 = vpop.f32.mrb[0].mxu0
        %1462 = vdwg.mxu0
        %v1464 = vsel %vm544, %v1414, 0
        %1466 = vmatprep.subr.bf16.mxu0 0
        %1467 = vmatpush1.bf16.xpose.msra.mxu0 %v1199
        %1468 = vmatprep.subr.bf16.mxu0 0
        %1469 = vmatpush1.bf16.xpose.msra.mxu0 0
        %1470 = vmatprep.subr.bf16.mxu0 0
        %1471 = vmatpush1.bf16.xpose.msra.mxu0 0
        %1472 = vmatprep.subr.bf16.mxu0 0
        %1473 = vmatpush1.bf16.xpose.msra.mxu0 0
        %1474 = vmatprep.subr.bf16.mxu0 0
        %1475 = vmatpush1.bf16.xpose.msra.mxu0 0
        %1476 = vmatprep.subr.bf16.mxu0 0
        %1477 = vmatpush1.bf16.xpose.msra.mxu0 0
        %1478 = vmatprep.subr.bf16.mxu0 0
        %1479 = vmatpush1.bf16.xpose.msra.mxu0 0
        %1480 = vmatprep.subr.bf16.mxu0 0
        %1481 = vmatpush1.bf16.xpose.msra.mxu0 0
        %1482 = vmatprep.subr.bf16.mxu0 0
        %1483 = vmatpush1.bf16.xpose.msra.mxu0 0
        %1484 = vmatprep.subr.bf16.mxu0 0
        %1485 = vmatpush1.bf16.xpose.msra.mxu0 0
        %1486 = vmatprep.subr.bf16.mxu0 0
        %1487 = vmatpush1.bf16.xpose.msra.mxu0 0
        %1488 = vmatprep.subr.bf16.mxu0 0
        %1489 = vmatpush1.bf16.xpose.msra.mxu0 0
        %1490 = vmatprep.subr.bf16.mxu0 0
        %1491 = vmatpush1.bf16.xpose.msra.mxu0 0
        %1492 = vmatprep.subr.bf16.mxu0 0
        %1493 = vmatpush1.bf16.xpose.msra.mxu0 0
        %1494 = vmatprep.subr.bf16.mxu0 0
        %1495 = vmatpush1.bf16.xpose.msra.mxu0 0
        %1496 = vmatprep.subr.bf16.mxu0 0
        %1497 = vmatpush1.bf16.xpose.msra.mxu0 0
        %1498 = vmatprep.mubr.bf16.mxu0 0
        %1499 = vmatmul.mubr.bf16.gmra.mrb[0].mxu0 %v1464
        %v1500 = vpop.f32.mrb[0].mxu0
        %v1501 = vadd.f32 %v1458, %v1500
        %v1502 = vpop.f32.mrb[0].mxu0
        %v1503 = vpop.f32.mrb[0].mxu0
        %v1504 = vpop.f32.mrb[0].mxu0
        %1505 = vdwg.mxu0
        %v1506 = vld [vmem:[%s10] sm:$0xff]
        %1508 = vset.pattern.permute.xlu0 0
        %1509 = vperm.xlu0 %1508, %v1506
        %v1510 = vpop.permute.xlu0 %1509
        %v1512 = vadd.f32 %v1501, %v1510
        %s1513 = scalar_lea.vmem %s406, 16 [#allocation2]
        %1514 = vst.msk [vmem:[%s1513] sm:$0xff] %vm642, %v1512
        %s1515 = scalar_lea.vmem %s416, 24
        %v1516 = vld [vmem:[%s1515] sm:$0xf]
        %v1517 = vld [vmem:[%s1515 + $0x4] sm:$0xf]
        %v1518 = vld [vmem:[%s2] sm:$0x3]
        %v1521 = vunpack.c.l.b16 %v1516
        %v1522 = vunpack.c.l.b16 %v1517
        %v1523 = vpack.c.b16 %v1522, %v1521
        %v1525 = vsel %vm544, %v1523, 0
        %v1528 = vsel %vm548, %v1518, 0
        %1530 = vmatprep.subr.bf16.mxu0 0
        %1531 = vmatpush1.bf16.msra.mxu0 %v1528
        %1532 = vmatprep.subr.bf16.mxu0 0
        %1533 = vmatpush1.bf16.msra.mxu0 0
        %1534 = vmatprep.subr.bf16.mxu0 0
        %1535 = vmatpush1.bf16.msra.mxu0 0
        %1536 = vmatprep.subr.bf16.mxu0 0
        %1537 = vmatpush1.bf16.msra.mxu0 0
        %1538 = vmatprep.subr.bf16.mxu0 0
        %1539 = vmatpush1.bf16.msra.mxu0 0
        %1540 = vmatprep.subr.bf16.mxu0 0
        %1541 = vmatpush1.bf16.msra.mxu0 0
        %1542 = vmatprep.subr.bf16.mxu0 0
        %1543 = vmatpush1.bf16.msra.mxu0 0
        %1544 = vmatprep.subr.bf16.mxu0 0
        %1545 = vmatpush1.bf16.msra.mxu0 0
        %1546 = vmatprep.subr.bf16.mxu0 0
        %1547 = vmatpush1.bf16.msra.mxu0 0
        %1548 = vmatprep.subr.bf16.mxu0 0
        %1549 = vmatpush1.bf16.msra.mxu0 0
        %1550 = vmatprep.subr.bf16.mxu0 0
        %1551 = vmatpush1.bf16.msra.mxu0 0
        %1552 = vmatprep.subr.bf16.mxu0 0
        %1553 = vmatpush1.bf16.msra.mxu0 0
        %1554 = vmatprep.subr.bf16.mxu0 0
        %1555 = vmatpush1.bf16.msra.mxu0 0
        %1556 = vmatprep.subr.bf16.mxu0 0
        %1557 = vmatpush1.bf16.msra.mxu0 0
        %1558 = vmatprep.subr.bf16.mxu0 0
        %1559 = vmatpush1.bf16.msra.mxu0 0
        %1560 = vmatprep.subr.bf16.mxu0 0
        %1561 = vmatpush1.bf16.msra.mxu0 0
        %1562 = vmatprep.mubr.bf16.mxu0 0
        %1563 = vmatmul.mubr.bf16.gmra.mrb[0].mxu0 %v1525
        %v1564 = vpop.f32.mrb[0].mxu0
        %v1565 = vadd.f32 %v478, %v1564
        %v1566 = vpop.f32.mrb[0].mxu0
        %v1567 = vpop.f32.mrb[0].mxu0
        %v1568 = vadd.f32 %v481, %v1567
        %v1569 = vpop.f32.mrb[0].mxu0
        %1570 = vdwg.mxu0
        %v1571 = vmul.f32 %v1565, 0.25
        %v1572 = vmul.f32 %v1568, 0.25
        %v1573 = vld [vmem:[%s5] sm:$0x3]
        %v1575 = vsel %vm548, %v1573, 0
        %1577 = vmatprep.subr.bf16.mxu0 0
        %1578 = vmatpush1.bf16.msra.mxu0 %v1575
        %1579 = vmatprep.subr.bf16.mxu0 0
        %1580 = vmatpush1.bf16.msra.mxu0 0
        %1581 = vmatprep.subr.bf16.mxu0 0
        %1582 = vmatpush1.bf16.msra.mxu0 0
        %1583 = vmatprep.subr.bf16.mxu0 0
        %1584 = vmatpush1.bf16.msra.mxu0 0
        %1585 = vmatprep.subr.bf16.mxu0 0
        %1586 = vmatpush1.bf16.msra.mxu0 0
        %1587 = vmatprep.subr.bf16.mxu0 0
        %1588 = vmatpush1.bf16.msra.mxu0 0
        %1589 = vmatprep.subr.bf16.mxu0 0
        %1590 = vmatpush1.bf16.msra.mxu0 0
        %1591 = vmatprep.subr.bf16.mxu0 0
        %1592 = vmatpush1.bf16.msra.mxu0 0
        %1593 = vmatprep.subr.bf16.mxu0 0
        %1594 = vmatpush1.bf16.msra.mxu0 0
        %1595 = vmatprep.subr.bf16.mxu0 0
        %1596 = vmatpush1.bf16.msra.mxu0 0
        %1597 = vmatprep.subr.bf16.mxu0 0
        %1598 = vmatpush1.bf16.msra.mxu0 0
        %1599 = vmatprep.subr.bf16.mxu0 0
        %1600 = vmatpush1.bf16.msra.mxu0 0
        %1601 = vmatprep.subr.bf16.mxu0 0
        %1602 = vmatpush1.bf16.msra.mxu0 0
        %1603 = vmatprep.subr.bf16.mxu0 0
        %1604 = vmatpush1.bf16.msra.mxu0 0
        %1605 = vmatprep.subr.bf16.mxu0 0
        %1606 = vmatpush1.bf16.msra.mxu0 0
        %1607 = vmatprep.subr.bf16.mxu0 0
        %1608 = vmatpush1.bf16.msra.mxu0 0
        %1609 = vmatprep.mubr.bf16.mxu0 0
        %1610 = vmatmul.mubr.bf16.gmra.mrb[0].mxu0 %v1525
        %v1611 = vpop.f32.mrb[0].mxu0
        %v1612 = vadd.f32 %v530, %v1611
        %v1613 = vpop.f32.mrb[0].mxu0
        %v1614 = vpop.f32.mrb[0].mxu0
        %v1615 = vadd.f32 %v533, %v1614
        %v1616 = vpop.f32.mrb[0].mxu0
        %1617 = vdwg.mxu0
        %v1618 = vpack.c.bf16 %v1615, %v1612
        %v1619 = vpack.c.bf16 %v1572, %v1571
        %v1621 = vsel %vm642, %v1618, 0
        %v1624 = vsel %vm642, %v1619, 0
        %1626 = vmatprep.subr.bf16.mxu0 0
        %1627 = vmatpush1.bf16.xpose.msra.mxu0 %v1624
        %1628 = vmatprep.subr.bf16.mxu0 0
        %1629 = vmatpush1.bf16.xpose.msra.mxu0 0
        %1630 = vmatprep.subr.bf16.mxu0 0
        %1631 = vmatpush1.bf16.xpose.msra.mxu0 0
        %1632 = vmatprep.subr.bf16.mxu0 0
        %1633 = vmatpush1.bf16.xpose.msra.mxu0 0
        %1634 = vmatprep.subr.bf16.mxu0 0
        %1635 = vmatpush1.bf16.xpose.msra.mxu0 0
        %1636 = vmatprep.subr.bf16.mxu0 0
        %1637 = vmatpush1.bf16.xpose.msra.mxu0 0
        %1638 = vmatprep.subr.bf16.mxu0 0
        %1639 = vmatpush1.bf16.xpose.msra.mxu0 0
        %1640 = vmatprep.subr.bf16.mxu0 0
        %1641 = vmatpush1.bf16.xpose.msra.mxu0 0
        %1642 = vmatprep.subr.bf16.mxu0 0
        %1643 = vmatpush1.bf16.xpose.msra.mxu0 0
        %1644 = vmatprep.subr.bf16.mxu0 0
        %1645 = vmatpush1.bf16.xpose.msra.mxu0 0
        %1646 = vmatprep.subr.bf16.mxu0 0
        %1647 = vmatpush1.bf16.xpose.msra.mxu0 0
        %1648 = vmatprep.subr.bf16.mxu0 0
        %1649 = vmatpush1.bf16.xpose.msra.mxu0 0
        %1650 = vmatprep.subr.bf16.mxu0 0
        %1651 = vmatpush1.bf16.xpose.msra.mxu0 0
        %1652 = vmatprep.subr.bf16.mxu0 0
        %1653 = vmatpush1.bf16.xpose.msra.mxu0 0
        %1654 = vmatprep.subr.bf16.mxu0 0
        %1655 = vmatpush1.bf16.xpose.msra.mxu0 0
        %1656 = vmatprep.subr.bf16.mxu0 0
        %1657 = vmatpush1.bf16.xpose.msra.mxu0 0
        %1658 = vmatprep.mubr.bf16.mxu0 0
        %1659 = vmatmul.mubr.bf16.gmra.mrb[0].mxu0 %v1621
        %v1660 = vpop.f32.mrb[0].mxu0
        %v1661 = vadd.f32 0.0, %v1660
        %v1662 = vpop.f32.mrb[0].mxu0
        %v1663 = vpop.f32.mrb[0].mxu0
        %v1664 = vadd.f32 0.0, %v1663
        %v1665 = vpop.f32.mrb[0].mxu0
        %1666 = vdwg.mxu0
        %v1667 = vsel %vm642, %v1661, -inf
        %v1668 = vsel %vm642, %v1664, -inf
        %v1669 = vmax.f32 %v1667, %v1668
        %v1670 = vrot.slane %v1669, 4
        %v1671 = vmax.f32 %v1669, %v1670
        %v1672 = vrot.slane %v1671, 2
        %v1673 = vmax.f32 %v1671, %v1672
        %v1674 = vrot.slane %v1673, 1
        %v1675 = vmax.f32 %v1673, %v1674
        %v1676 = vsub.f32 %v1661, %v1675
        %v1677 = vsub.f32 %v1664, %v1675
        %v1678 = vmul.f32 %v1676, 1.442695
        %v1679 = vpow.pop %v1678
        %v1680 = vmul.f32 %v1677, 1.442695
        %v1681 = vpow.pop %v1680
        %v1682 = vsel %vm642, %v1679, 0.0
        %v1683 = vsel %vm642, %v1681, 0.0
        %v1684 = vadd.f32 %v1682, %v1683
        %v1685 = vrot.slane %v1684, 4
        %v1686 = vadd.f32 %v1684, %v1685
        %v1687 = vrot.slane %v1686, 2
        %v1688 = vadd.f32 %v1686, %v1687
        %v1689 = vrot.slane %v1688, 1
        %v1690 = vadd.f32 %v1688, %v1689
        %v1691 = vrcp.pop %v1690
        %v1692 = vmul.f32 %v1679, %v1691
        %v1693 = vmul.f32 %v1681, %v1691
        %v1694 = vpack.c.bf16 %v1693, %v1692
        %v1697 = vsel %vm642, %v1694, 0
        %1699 = vmatprep.subr.bf16.mxu0 0
        %1700 = vmatpush1.bf16.msra.mxu0 %v1523
        %1701 = vmatprep.subr.bf16.mxu0 0
        %1702 = vmatpush1.bf16.msra.mxu0 0
        %1703 = vmatprep.subr.bf16.mxu0 0
        %1704 = vmatpush1.bf16.msra.mxu0 0
        %1705 = vmatprep.subr.bf16.mxu0 0
        %1706 = vmatpush1.bf16.msra.mxu0 0
        %1707 = vmatprep.subr.bf16.mxu0 0
        %1708 = vmatpush1.bf16.msra.mxu0 0
        %1709 = vmatprep.subr.bf16.mxu0 0
        %1710 = vmatpush1.bf16.msra.mxu0 0
        %1711 = vmatprep.subr.bf16.mxu0 0
        %1712 = vmatpush1.bf16.msra.mxu0 0
        %1713 = vmatprep.subr.bf16.mxu0 0
        %1714 = vmatpush1.bf16.msra.mxu0 0
        %1715 = vmatprep.subr.bf16.mxu0 0
        %1716 = vmatpush1.bf16.msra.mxu0 0
        %1717 = vmatprep.subr.bf16.mxu0 0
        %1718 = vmatpush1.bf16.msra.mxu0 0
        %1719 = vmatprep.subr.bf16.mxu0 0
        %1720 = vmatpush1.bf16.msra.mxu0 0
        %1721 = vmatprep.subr.bf16.mxu0 0
        %1722 = vmatpush1.bf16.msra.mxu0 0
        %1723 = vmatprep.subr.bf16.mxu0 0
        %1724 = vmatpush1.bf16.msra.mxu0 0
        %1725 = vmatprep.subr.bf16.mxu0 0
        %1726 = vmatpush1.bf16.msra.mxu0 0
        %1727 = vmatprep.subr.bf16.mxu0 0
        %1728 = vmatpush1.bf16.msra.mxu0 0
        %1729 = vmatprep.subr.bf16.mxu0 0
        %1730 = vmatpush1.bf16.msra.mxu0 0
        %1731 = vmatprep.mubr.bf16.mxu0 0
        %1732 = vmatmul.mubr.bf16.gmra.mrb[0].mxu0 %v1697
        %v1733 = vpop.f32.mrb[0].mxu0
        %v1734 = vadd.f32 0.0, %v1733
        %v1735 = vpop.f32.mrb[0].mxu0
        %v1736 = vpop.f32.mrb[0].mxu0
        %v1737 = vadd.f32 0.0, %v1736
        %v1738 = vpop.f32.mrb[0].mxu0
        %1739 = vdwg.mxu0
        %v1740 = vld [vmem:[%s8] sm:$0xf]
        %v1741 = vld [vmem:[%s9] sm:$0xf]
        %v1742 = vpack.c.bf16 %v1737, %v1734
        %v1744 = vsel %vm544, %v1741, 0
        %v1747 = vsel %vm544, %v1742, 0
        %1749 = vmatprep.subr.bf16.mxu0 0
        %1750 = vmatpush1.bf16.xpose.msra.mxu0 %v1747
        %1751 = vmatprep.subr.bf16.mxu0 0
        %1752 = vmatpush1.bf16.xpose.msra.mxu0 0
        %1753 = vmatprep.subr.bf16.mxu0 0
        %1754 = vmatpush1.bf16.xpose.msra.mxu0 0
        %1755 = vmatprep.subr.bf16.mxu0 0
        %1756 = vmatpush1.bf16.xpose.msra.mxu0 0
        %1757 = vmatprep.subr.bf16.mxu0 0
        %1758 = vmatpush1.bf16.xpose.msra.mxu0 0
        %1759 = vmatprep.subr.bf16.mxu0 0
        %1760 = vmatpush1.bf16.xpose.msra.mxu0 0
        %1761 = vmatprep.subr.bf16.mxu0 0
        %1762 = vmatpush1.bf16.xpose.msra.mxu0 0
        %1763 = vmatprep.subr.bf16.mxu0 0
        %1764 = vmatpush1.bf16.xpose.msra.mxu0 0
        %1765 = vmatprep.subr.bf16.mxu0 0
        %1766 = vmatpush1.bf16.xpose.msra.mxu0 0
        %1767 = vmatprep.subr.bf16.mxu0 0
        %1768 = vmatpush1.bf16.xpose.msra.mxu0 0
        %1769 = vmatprep.subr.bf16.mxu0 0
        %1770 = vmatpush1.bf16.xpose.msra.mxu0 0
        %1771 = vmatprep.subr.bf16.mxu0 0
        %1772 = vmatpush1.bf16.xpose.msra.mxu0 0
        %1773 = vmatprep.subr.bf16.mxu0 0
        %1774 = vmatpush1.bf16.xpose.msra.mxu0 0
        %1775 = vmatprep.subr.bf16.mxu0 0
        %1776 = vmatpush1.bf16.xpose.msra.mxu0 0
        %1777 = vmatprep.subr.bf16.mxu0 0
        %1778 = vmatpush1.bf16.xpose.msra.mxu0 0
        %1779 = vmatprep.subr.bf16.mxu0 0
        %1780 = vmatpush1.bf16.xpose.msra.mxu0 0
        %1781 = vmatprep.mubr.bf16.mxu0 0
        %1782 = vmatmul.mubr.bf16.gmra.mrb[0].mxu0 %v1744
        %v1783 = vpop.f32.mrb[0].mxu0
        %v1784 = vadd.f32 0.0, %v1783
        %v1785 = vpop.f32.mrb[0].mxu0
        %v1786 = vpop.f32.mrb[0].mxu0
        %v1787 = vpop.f32.mrb[0].mxu0
        %1788 = vdwg.mxu0
        %v1790 = vsel %vm544, %v1740, 0
        %1792 = vmatprep.subr.bf16.mxu0 0
        %1793 = vmatpush1.bf16.xpose.msra.mxu0 %v1525
        %1794 = vmatprep.subr.bf16.mxu0 0
        %1795 = vmatpush1.bf16.xpose.msra.mxu0 0
        %1796 = vmatprep.subr.bf16.mxu0 0
        %1797 = vmatpush1.bf16.xpose.msra.mxu0 0
        %1798 = vmatprep.subr.bf16.mxu0 0
        %1799 = vmatpush1.bf16.xpose.msra.mxu0 0
        %1800 = vmatprep.subr.bf16.mxu0 0
        %1801 = vmatpush1.bf16.xpose.msra.mxu0 0
        %1802 = vmatprep.subr.bf16.mxu0 0
        %1803 = vmatpush1.bf16.xpose.msra.mxu0 0
        %1804 = vmatprep.subr.bf16.mxu0 0
        %1805 = vmatpush1.bf16.xpose.msra.mxu0 0
        %1806 = vmatprep.subr.bf16.mxu0 0
        %1807 = vmatpush1.bf16.xpose.msra.mxu0 0
        %1808 = vmatprep.subr.bf16.mxu0 0
        %1809 = vmatpush1.bf16.xpose.msra.mxu0 0
        %1810 = vmatprep.subr.bf16.mxu0 0
        %1811 = vmatpush1.bf16.xpose.msra.mxu0 0
        %1812 = vmatprep.subr.bf16.mxu0 0
        %1813 = vmatpush1.bf16.xpose.msra.mxu0 0
        %1814 = vmatprep.subr.bf16.mxu0 0
        %1815 = vmatpush1.bf16.xpose.msra.mxu0 0
        %1816 = vmatprep.subr.bf16.mxu0 0
        %1817 = vmatpush1.bf16.xpose.msra.mxu0 0
        %1818 = vmatprep.subr.bf16.mxu0 0
        %1819 = vmatpush1.bf16.xpose.msra.mxu0 0
        %1820 = vmatprep.subr.bf16.mxu0 0
        %1821 = vmatpush1.bf16.xpose.msra.mxu0 0
        %1822 = vmatprep.subr.bf16.mxu0 0
        %1823 = vmatpush1.bf16.xpose.msra.mxu0 0
        %1824 = vmatprep.mubr.bf16.mxu0 0
        %1825 = vmatmul.mubr.bf16.gmra.mrb[0].mxu0 %v1790
        %v1826 = vpop.f32.mrb[0].mxu0
        %v1827 = vadd.f32 %v1784, %v1826
        %v1828 = vpop.f32.mrb[0].mxu0
        %v1829 = vpop.f32.mrb[0].mxu0
        %v1830 = vpop.f32.mrb[0].mxu0
        %1831 = vdwg.mxu0
        %v1832 = vld [vmem:[%s10] sm:$0xff]
        %1834 = vset.pattern.permute.xlu0 0
        %1835 = vperm.xlu0 %1834, %v1832
        %v1836 = vpop.permute.xlu0 %1835
        %v1838 = vadd.f32 %v1827, %v1836
        %s1839 = scalar_lea.vmem %s406, 24 [#allocation2]
        %1840 = vst.msk [vmem:[%s1839] sm:$0xff] %vm642, %v1838
        %s1841 = sand.u32 %s285, 1
        %s1842 = scalar_lea.sflag [#allocation3], %s1841
        %s1843 = sand.u32 %s285, 1
        %s1844 = smul.addr %s1843, 32
        %s1845 = scalar_lea.vmem [#allocation2], %s1844
        // Predicated region
        $region65: #{tpu_custom_call.1} parent=63 // pred_check
          %p1846 = pneg %p295
        $region66: #{tpu_custom_call.1} parent=63 // pred_check_branch
          %1848 = sbr.rel (%p1846) target = $region68
        $region67: #{tpu_custom_call.1} parent=63 // pred_region
          %s1849 = smul.u32 4, %s30
          %s1851 = ssub.s32 512, 512
          %1852 = vsyncadd %s1842, %s1851
          %s1853 = smul.addr %s29, 8
          %s1854 = sadd.s32 %s1849, %s1853
          %s1855 = smul.addr %s1854, 128
          %s1856 = scalar_lea.hbm %s11, %s1855
          %s1857 = sshll.u32 %s1845, 4
          %s1858 = int_to_ptr.vmem [resolvable:$true] %s1857
          %1863 = dma.vmem_to_hbm [thread:$0]  %s1858, 512, %s1856, %s1842, 128, 128, 8
        $region68: #{tpu_custom_call.1} parent=63 // pred_fallthru
          _
      $region64: #{tpu_custom_call.1} parent=5 // pred_fallthru
        _
      %p1864 = scmp.le.s32.totalorder 2, %s20
      // Predicated region
      $region69: #{tpu_custom_call.1} parent=5 // pred_check
        %p1865 = pneg %p1864
      $region70: #{tpu_custom_call.1} parent=5 // pred_check_branch
        %1867 = sbr.rel (%p1865) target = $region72
      $region71: #{tpu_custom_call.1} parent=5 // pred_region
        %s1868 = ssub.s32 %s20, 2
        // Predicated region
        $region73: #{tpu_custom_call.1} parent=71 // pred_check
          %p1869 = pneg %p301
        $region74: #{tpu_custom_call.1} parent=71 // pred_check_branch
          %1871 = sbr.rel (%p1869) target = $region76
        $region75: #{tpu_custom_call.1} parent=71 // pred_region
          %s1872 = sand.u32 %s286, 1
          %s1873 = scalar_lea.sflag [#allocation3], %s1872
          %s1874 = sand.u32 %s286, 1
          %s1875 = smul.addr %s1874, 32
          %s1876 = scalar_lea.vmem [#allocation2], %s1875
          %1877 = dma.done %s1873, 512
        $region76: #{tpu_custom_call.1} parent=71 // pred_fallthru
          _
      $region72: #{tpu_custom_call.1} parent=5 // pred_fallthru
        _
    $region6: #{tpu_custom_call.1} parent=1 // loop_footer
      %s24 = sadd.s32 1, %s20
    $region7: #{tpu_custom_call.1} parent=1 // loop_footer_branch
      %19 = sbr.rel target = $region3
    $region8: #{tpu_custom_call.1} parent=1 // loop_exit
      _
    %1878 = vsyncpa [#allocation3], 1
    %s1879 = scalar_lea.sflag [#allocation3], 1
    %1880 = vsyncpa %s1879, 1

</llo_original>
